<compile_context>
chip_gen: v6e
topology: v6e:2x2x1
jax: 0.10.0
libtpu: 0.0.40
codegen_flags: <defaults>
</compile_context>

<pallas_src>
import jax
import jax.numpy as jnp
from jax import lax
from jax.experimental import pallas as pl
from jax.experimental.pallas import tpu as pltpu


def _round_up(n: int, m: int) -> int:
    return ((n + m - 1) // m) * m


def _pick_time_tile(T: int, max_tc: int) -> int:
    """Largest time chunk <= max_tc that divides T and satisfies the (8,128) rule."""
    if T <= max_tc:
        return T
    for tc in range(max_tc, 0, -1):
        if T % tc == 0 and tc % 8 == 0:
            return tc
    return T  # fall back: whole sequence resident (always layout-legal)


def rnn_kernel(x_ref, wih_ref, whh_ref, b_ref, wfc_ref, bfc_ref, out_ref,
               xw_ref, h_ref):
    # x_ref:   (Bt, Tc, I)   time chunk of the ORIGINAL (B, T, I) input (no transpose)
    # wih_ref: (I, Hp)       W_ih^T, zero-padded, compute dtype (bf16 by default)
    # whh_ref: (Hp, Hp)      W_hh^T, zero-padded, compute dtype
    # b_ref:   (1, Hp)       b_ih + b_hh, f32
    # wfc_ref: (Hp, Op)      W_fc^T, f32 (used once per sequence)
    # bfc_ref: (1, Op)       b_fc, f32
    # out_ref: (Bt, Op)      lane-dense padded output block
    # xw_ref:  (Tc, Bt, Hp)  chunk input projection, compute dtype (bf16 scratch)
    # h_ref:   (Bt, Hp)      carried hidden state (f32), persists across time blocks
    Tc = x_ref.shape[1]
    cdt = wih_ref.dtype
    t_blk = pl.program_id(1)

    # Reset the carried hidden state at the start of each sequence (batch block).
    @pl.when(t_blk == 0)
    def _():
        h_ref[...] = jnp.zeros_like(h_ref)

    # ---- Phase 0: hoisted chunk input projection ------------------------------
    # One (Bt, I) @ (I, Hp) MXU pass per timestep, written straight to the bf16
    # scratch so at most one (Bt, Hp) f32 tile is live in vregs (no spill).
    wih = wih_ref[...]          # loaded once (resident constant block)
    bias = b_ref[...]
    for t in range(Tc):         # static, bounded unroll (Tc <= max_time_tile)
        x_t = x_ref[:, t, :].astype(cdt)
        xw = jnp.dot(x_t, wih, preferred_element_type=jnp.float32) + bias
        xw_ref[t] = xw.astype(cdt)

    # ---- Phase 1: serial recurrence over this time chunk ----------------------
    # Only the unavoidable (Bt, Hp) @ (Hp, Hp) matmul + add + tanh per step.
    whh = whh_ref[...]
    h = h_ref[...]
    for t in range(Tc):
        pre = jnp.dot(h.astype(cdt), whh, preferred_element_type=jnp.float32)
        h = jnp.tanh(pre + xw_ref[t].astype(jnp.float32))
    h_ref[...] = h

    # ---- Phase 2: final FC, fused after the last time chunk -------------------
    @pl.when(t_blk == pl.num_programs(1) - 1)
    def _():
        out_ref[...] = (
            jnp.dot(h, wfc_ref[...], preferred_element_type=jnp.float32)
            + bfc_ref[...]
        ).astype(out_ref.dtype)


def classical_rnn_forward(x_btc, w_ih, w_hh, b_ih, b_hh, w_fc, b_fc,
                          *, compute_dtype=jnp.bfloat16,
                          batch_tile=None, time_tile=None, max_time_tile=32):
    """x_btc: (batch, n_steps, input_size) f32 — same layout as the PyTorch forward."""
    B, T, I = x_btc.shape
    H = w_ih.shape[0]
    O = w_fc.shape[0]
    Hp = _round_up(H, 128)   # lane-dense hidden width (zero padding, exact semantics)
    Op = _round_up(O, 128)   # lane-dense output width
    cdt = compute_dtype

    # ---- batch tiling: grid axis 0, "parallel" (v7x megacore split) -----------
    Bt = min(_round_up(B, 8), 128) if batch_tile is None else batch_tile
    Bp = _round_up(B, Bt)
    assert Bt % 8 == 0 or Bt == Bp, "batch tile must be a multiple of 8 (f32 sublane)"
    nB = Bp // Bt

    # ---- time tiling: grid axis 1, "arbitrary" (serial recurrence) ------------
    Tc = _pick_time_tile(T, max_time_tile) if time_tile is None else time_tile
    assert T % Tc == 0 and (Tc == T or Tc % 8 == 0), "time tile must divide T (and be a multiple of 8)"
    nT = T // Tc

    x_p = x_btc.astype(jnp.float32)
    if Bp != B:
        x_p = jnp.pad(x_p, ((0, Bp - B), (0, 0), (0, 0)))   # zero rows, sliced off below

    # Pre-transpose + zero-pad weights so the kernel does plain row-major matmuls.
    wih_t = jnp.zeros((I, Hp), cdt).at[:, :H].set(jnp.transpose(w_ih).astype(cdt))
    whh_t = jnp.zeros((Hp, Hp), cdt).at[:H, :H].set(jnp.transpose(w_hh).astype(cdt))
    b_rnn = jnp.zeros((1, Hp), jnp.float32).at[:, :H].set((b_ih + b_hh)[None, :])
    wfc_t = jnp.zeros((Hp, Op), jnp.float32).at[:H, :O].set(jnp.transpose(w_fc))
    bfc2 = jnp.zeros((1, Op), jnp.float32).at[:, :O].set(b_fc[None, :])

    # ---- explicit scoped-VMEM budget (double-buffered X block + resident rest) --
    isz = jnp.dtype(cdt).itemsize
    x_blk_bytes = Bt * _round_up(Tc, 8) * _round_up(I, 128) * 4
    xw_bytes = Tc * _round_up(Bt, 16) * Hp * isz
    h_bytes = _round_up(Bt, 8) * Hp * 4
    w_bytes = (_round_up(I, 16) * Hp + Hp * Hp) * isz + (Hp + Hp * Op + Op) * 4
    out_bytes = _round_up(Bt, 8) * Op * 4
    vmem_needed = 2 * x_blk_bytes + xw_bytes + h_bytes + w_bytes + 2 * out_bytes
    vmem_limit = int(min(max(2 * vmem_needed, 16 * 1024 * 1024), 48 * 1024 * 1024))

    out_padded = pl.pallas_call(
        rnn_kernel,
        out_shape=jax.ShapeDtypeStruct((Bp, Op), jnp.float32),
        grid_spec=pltpu.PrefetchScalarGridSpec(
            num_scalar_prefetch=0,
            grid=(nB, nT),
            in_specs=[
                pl.BlockSpec((Bt, Tc, I), lambda b, t: (b, t, 0)),   # X time chunk (no transpose)
                pl.BlockSpec((I, Hp), lambda b, t: (0, 0)),          # W_ih^T (resident)
                pl.BlockSpec((Hp, Hp), lambda b, t: (0, 0)),         # W_hh^T (resident)
                pl.BlockSpec((1, Hp), lambda b, t: (0, 0)),          # b_ih + b_hh
                pl.BlockSpec((Hp, Op), lambda b, t: (0, 0)),         # W_fc^T
                pl.BlockSpec((1, Op), lambda b, t: (0, 0)),          # b_fc
            ],
            out_specs=pl.BlockSpec((Bt, Op), lambda b, t: (b, 0)),   # resident across time axis
            scratch_shapes=[
                pltpu.VMEM((Tc, Bt, Hp), cdt),        # chunk input projection (bf16)
                pltpu.VMEM((Bt, Hp), jnp.float32),    # carried hidden state
            ],
        ),
        compiler_params=pltpu.CompilerParams(
            dimension_semantics=("parallel", "arbitrary"),
            vmem_limit_bytes=vmem_limit,
        ),
    )(x_p, wih_t, whh_t, b_rnn, wfc_t, bfc2)

    return out_padded[:B, :O]


def reference_forward(x_btc, w_ih, w_hh, b_ih, b_hh, w_fc, b_fc):
    """Plain-JAX f32 reference matching nn.RNN(tanh) + nn.Linear semantics."""
    x_tbc = jnp.transpose(x_btc, (1, 0, 2))
    B = x_btc.shape[0]
    H = w_ih.shape[0]
    h0 = jnp.zeros((B, H), jnp.float32)

    def step(h, x_t):
        h_new = jnp.tanh(x_t @ w_ih.T + b_ih + h @ w_hh.T + b_hh)
        return h_new, None

    h_final, _ = lax.scan(step, h0, x_tbc)
    return h_final @ w_fc.T + b_fc


if __name__ == "__main__":
    # Small shapes consistent with the module (input_size=28, hidden_size=64,
    # output_size=10); batch/n_steps chosen so the 2x2 (batch x time) grid,
    # the carried hidden state and the parallel batch axis are all exercised.
    batch_size = 16
    n_steps = 16
    input_size = 28
    hidden_size = 64
    output_size = 10

    key = jax.random.PRNGKey(0)
    kx, k1, k2, k3, k4, k5, k6 = jax.random.split(key, 7)
    bound = 1.0 / (hidden_size ** 0.5)
    w_ih = jax.random.uniform(k1, (hidden_size, input_size), jnp.float32, -bound, bound)
    w_hh = jax.random.uniform(k2, (hidden_size, hidden_size), jnp.float32, -bound, bound)
    b_ih = jax.random.uniform(k3, (hidden_size,), jnp.float32, -bound, bound)
    b_hh = jax.random.uniform(k4, (hidden_size,), jnp.float32, -bound, bound)
    w_fc = jax.random.uniform(k5, (output_size, hidden_size), jnp.float32, -bound, bound)
    b_fc = jax.random.uniform(k6, (output_size,), jnp.float32, -bound, bound)
    x = jax.random.normal(kx, (batch_size, n_steps, input_size), jnp.float32)

    ref = jax.block_until_ready(reference_forward(x, w_ih, w_hh, b_ih, b_hh, w_fc, b_fc))

    # 1) Exactness check: f32 operands, tight tolerance, 2x2 grid (carry + parallel axis).
    out_f32 = classical_rnn_forward(x, w_ih, w_hh, b_ih, b_hh, w_fc, b_fc,
                                    compute_dtype=jnp.float32,
                                    batch_tile=8, time_tile=8)
    out_f32 = jax.block_until_ready(out_f32)
    assert out_f32.shape == (batch_size, output_size)
    assert jnp.allclose(out_f32, ref, atol=1e-4, rtol=1e-4), "f32 Pallas output mismatch vs reference"

    # 2) Performance default: bf16 MXU operands / bf16 xw scratch, f32 accumulation
    #    and f32 add+tanh. Tolerance loosened for bf16 operand rounding over T steps
    #    (per review); observed error is ~1e-3..1e-2 at these shapes.
    out_bf16 = classical_rnn_forward(x, w_ih, w_hh, b_ih, b_hh, w_fc, b_fc,
                                     compute_dtype=jnp.bfloat16,
                                     batch_tile=8, time_tile=8)
    out_bf16 = jax.block_until_ready(out_bf16)
    assert out_bf16.shape == (batch_size, output_size)
    assert jnp.allclose(out_bf16, ref, atol=5e-2, rtol=5e-2), "bf16 Pallas output mismatch vs reference"

    print("KERNEL_OK")
</pallas_src>

<mosaic_0001>
module attributes {stable_mosaic.version = 11 : i64} {
  func.func @rnn_kernel(%arg0: i32, %arg1: i32, %arg2: memref<8x8x28xf32, #tpu.memory_space<vmem>>, %arg3: memref<28x128xf32, #tpu.memory_space<vmem>>, %arg4: memref<128x128xf32, #tpu.memory_space<vmem>>, %arg5: memref<1x128xf32, #tpu.memory_space<vmem>>, %arg6: memref<128x128xf32, #tpu.memory_space<vmem>>, %arg7: memref<1x128xf32, #tpu.memory_space<vmem>>, %arg8: memref<8x128xf32, #tpu.memory_space<vmem>>, %arg9: memref<8x8x128xf32, #tpu.memory_space<vmem>>, %arg10: memref<8x128xf32, #tpu.memory_space<vmem>>) attributes {dimension_semantics = [#tpu.dimension_semantics<parallel>, #tpu.dimension_semantics<arbitrary>], iteration_bounds = array<i64: 2, 2>, scalar_prefetch = 0 : i64, scratch_operands = 2 : i64, tpu.core_type = #tpu.core_type<tc>, window_params = [{transform_indices = @transform_0, window_bounds = array<i64: 8, 8, 28>}, {pipeline_mode = #tpu.pipeline_mode<synchronous>, transform_indices = @transform_1, window_bounds = array<i64: 28, 128>}, {pipeline_mode = #tpu.pipeline_mode<synchronous>, transform_indices = @transform_2, window_bounds = array<i64: 128, 128>}, {pipeline_mode = #tpu.pipeline_mode<synchronous>, transform_indices = @transform_3, window_bounds = array<i64: 1, 128>}, {pipeline_mode = #tpu.pipeline_mode<synchronous>, transform_indices = @transform_4, window_bounds = array<i64: 128, 128>}, {pipeline_mode = #tpu.pipeline_mode<synchronous>, transform_indices = @transform_5, window_bounds = array<i64: 1, 128>}, {transform_indices = @transform_6, window_bounds = array<i64: 8, 128>}]} {
    %c0_i32 = arith.constant 0 : i32
    %0 = arith.cmpi eq, %arg1, %c0_i32 : i32
    %1 = arith.extui %0 : i1 to i32
    %c0_i32_0 = arith.constant 0 : i32
    %2 = arith.cmpi ne, %1, %c0_i32_0 : i32
    scf.if %2 {
      %cst_91 = arith.constant 0.000000e+00 : f32
      %115 = vector.broadcast %cst_91 : f32 to vector<8x128xf32>
      %c0_92 = arith.constant 0 : index
      %c0_93 = arith.constant 0 : index
      %116 = vector.load %arg10[%c0_92, %c0_93] : memref<8x128xf32, #tpu.memory_space<vmem>>, vector<8x128xf32>
      tpu.vector_store %arg10[%c0_92, %c0_93], %115 {strides = array<i32>} : memref<8x128xf32, #tpu.memory_space<vmem>>, vector<8x128xf32>,
    } else {
    }
    %c0 = arith.constant 0 : index
    %c0_1 = arith.constant 0 : index
    %3 = vector.load %arg3[%c0, %c0_1] : memref<28x128xf32, #tpu.memory_space<vmem>>, vector<28x128xf32>
    %c0_2 = arith.constant 0 : index
    %c0_3 = arith.constant 0 : index
    %4 = vector.load %arg5[%c0_2, %c0_3] : memref<1x128xf32, #tpu.memory_space<vmem>>, vector<1x128xf32>
    %c0_4 = arith.constant 0 : index
    %c0_5 = arith.constant 0 : index
    %c0_6 = arith.constant 0 : index
    %5 = vector.load %arg2[%c0_4, %c0_5, %c0_6] : memref<8x8x28xf32, #tpu.memory_space<vmem>>, vector<8x1x28xf32>
    %6 = vector.shape_cast %5 : vector<8x1x28xf32> to vector<8x28xf32>
    %cst = arith.constant dense<0.000000e+00> : vector<8x128xf32>
    %7 = tpu.matmul %6, %3, %cst {dimension_numbers = #tpu.dot_dimension_numbers<[1], [0], [0], [1], [0, 0, 1, 1], [], []>} : vector<8x28xf32>, vector<28x128xf32>, vector<8x128xf32> -> vector<8x128xf32>
    %8 = vector.broadcast %4 : vector<1x128xf32> to vector<8x128xf32>
    %9 = arith.addf %7, %8 : vector<8x128xf32>
    %c0_7 = arith.constant 0 : index
    %c0_8 = arith.constant 0 : index
    %c0_9 = arith.constant 0 : index
    %10 = vector.load %arg9[%c0_7, %c0_8, %c0_9] : memref<8x8x128xf32, #tpu.memory_space<vmem>>, vector<1x8x128xf32>
    %11 = vector.shape_cast %10 : vector<1x8x128xf32> to vector<8x128xf32>
    %12 = vector.shape_cast %9 : vector<8x128xf32> to vector<1x8x128xf32>
    tpu.vector_store %arg9[%c0_7, %c0_8, %c0_9], %12 {strides = array<i32>} : memref<8x8x128xf32, #tpu.memory_space<vmem>>, vector<1x8x128xf32>,
    %c0_10 = arith.constant 0 : index
    %c1 = arith.constant 1 : index
    %c0_11 = arith.constant 0 : index
    %13 = vector.load %arg2[%c0_10, %c1, %c0_11] : memref<8x8x28xf32, #tpu.memory_space<vmem>>, vector<8x1x28xf32>
    %14 = vector.shape_cast %13 : vector<8x1x28xf32> to vector<8x28xf32>
    %cst_12 = arith.constant dense<0.000000e+00> : vector<8x128xf32>
    %15 = tpu.matmul %14, %3, %cst_12 {dimension_numbers = #tpu.dot_dimension_numbers<[1], [0], [0], [1], [0, 0, 1, 1], [], []>} : vector<8x28xf32>, vector<28x128xf32>, vector<8x128xf32> -> vector<8x128xf32>
    %16 = vector.broadcast %4 : vector<1x128xf32> to vector<8x128xf32>
    %17 = arith.addf %15, %16 : vector<8x128xf32>
    %c1_13 = arith.constant 1 : index
    %c0_14 = arith.constant 0 : index
    %c0_15 = arith.constant 0 : index
    %18 = vector.load %arg9[%c1_13, %c0_14, %c0_15] : memref<8x8x128xf32, #tpu.memory_space<vmem>>, vector<1x8x128xf32>
    %19 = vector.shape_cast %18 : vector<1x8x128xf32> to vector<8x128xf32>
    %20 = vector.shape_cast %17 : vector<8x128xf32> to vector<1x8x128xf32>
    tpu.vector_store %arg9[%c1_13, %c0_14, %c0_15], %20 {strides = array<i32>} : memref<8x8x128xf32, #tpu.memory_space<vmem>>, vector<1x8x128xf32>,
    %c0_16 = arith.constant 0 : index
    %c2 = arith.constant 2 : index
    %c0_17 = arith.constant 0 : index
    %21 = vector.load %arg2[%c0_16, %c2, %c0_17] : memref<8x8x28xf32, #tpu.memory_space<vmem>>, vector<8x1x28xf32>
    %22 = vector.shape_cast %21 : vector<8x1x28xf32> to vector<8x28xf32>
    %cst_18 = arith.constant dense<0.000000e+00> : vector<8x128xf32>
    %23 = tpu.matmul %22, %3, %cst_18 {dimension_numbers = #tpu.dot_dimension_numbers<[1], [0], [0], [1], [0, 0, 1, 1], [], []>} : vector<8x28xf32>, vector<28x128xf32>, vector<8x128xf32> -> vector<8x128xf32>
    %24 = vector.broadcast %4 : vector<1x128xf32> to vector<8x128xf32>
    %25 = arith.addf %23, %24 : vector<8x128xf32>
    %c2_19 = arith.constant 2 : index
    %c0_20 = arith.constant 0 : index
    %c0_21 = arith.constant 0 : index
    %26 = vector.load %arg9[%c2_19, %c0_20, %c0_21] : memref<8x8x128xf32, #tpu.memory_space<vmem>>, vector<1x8x128xf32>
    %27 = vector.shape_cast %26 : vector<1x8x128xf32> to vector<8x128xf32>
    %28 = vector.shape_cast %25 : vector<8x128xf32> to vector<1x8x128xf32>
    tpu.vector_store %arg9[%c2_19, %c0_20, %c0_21], %28 {strides = array<i32>} : memref<8x8x128xf32, #tpu.memory_space<vmem>>, vector<1x8x128xf32>,
    %c0_22 = arith.constant 0 : index
    %c3 = arith.constant 3 : index
    %c0_23 = arith.constant 0 : index
    %29 = vector.load %arg2[%c0_22, %c3, %c0_23] : memref<8x8x28xf32, #tpu.memory_space<vmem>>, vector<8x1x28xf32>
    %30 = vector.shape_cast %29 : vector<8x1x28xf32> to vector<8x28xf32>
    %cst_24 = arith.constant dense<0.000000e+00> : vector<8x128xf32>
    %31 = tpu.matmul %30, %3, %cst_24 {dimension_numbers = #tpu.dot_dimension_numbers<[1], [0], [0], [1], [0, 0, 1, 1], [], []>} : vector<8x28xf32>, vector<28x128xf32>, vector<8x128xf32> -> vector<8x128xf32>
    %32 = vector.broadcast %4 : vector<1x128xf32> to vector<8x128xf32>
    %33 = arith.addf %31, %32 : vector<8x128xf32>
    %c3_25 = arith.constant 3 : index
    %c0_26 = arith.constant 0 : index
    %c0_27 = arith.constant 0 : index
    %34 = vector.load %arg9[%c3_25, %c0_26, %c0_27] : memref<8x8x128xf32, #tpu.memory_space<vmem>>, vector<1x8x128xf32>
    %35 = vector.shape_cast %34 : vector<1x8x128xf32> to vector<8x128xf32>
    %36 = vector.shape_cast %33 : vector<8x128xf32> to vector<1x8x128xf32>
    tpu.vector_store %arg9[%c3_25, %c0_26, %c0_27], %36 {strides = array<i32>} : memref<8x8x128xf32, #tpu.memory_space<vmem>>, vector<1x8x128xf32>,
    %c0_28 = arith.constant 0 : index
    %c4 = arith.constant 4 : index
    %c0_29 = arith.constant 0 : index
    %37 = vector.load %arg2[%c0_28, %c4, %c0_29] : memref<8x8x28xf32, #tpu.memory_space<vmem>>, vector<8x1x28xf32>
    %38 = vector.shape_cast %37 : vector<8x1x28xf32> to vector<8x28xf32>
    %cst_30 = arith.constant dense<0.000000e+00> : vector<8x128xf32>
    %39 = tpu.matmul %38, %3, %cst_30 {dimension_numbers = #tpu.dot_dimension_numbers<[1], [0], [0], [1], [0, 0, 1, 1], [], []>} : vector<8x28xf32>, vector<28x128xf32>, vector<8x128xf32> -> vector<8x128xf32>
    %40 = vector.broadcast %4 : vector<1x128xf32> to vector<8x128xf32>
    %41 = arith.addf %39, %40 : vector<8x128xf32>
    %c4_31 = arith.constant 4 : index
    %c0_32 = arith.constant 0 : index
    %c0_33 = arith.constant 0 : index
    %42 = vector.load %arg9[%c4_31, %c0_32, %c0_33] : memref<8x8x128xf32, #tpu.memory_space<vmem>>, vector<1x8x128xf32>
    %43 = vector.shape_cast %42 : vector<1x8x128xf32> to vector<8x128xf32>
    %44 = vector.shape_cast %41 : vector<8x128xf32> to vector<1x8x128xf32>
    tpu.vector_store %arg9[%c4_31, %c0_32, %c0_33], %44 {strides = array<i32>} : memref<8x8x128xf32, #tpu.memory_space<vmem>>, vector<1x8x128xf32>,
    %c0_34 = arith.constant 0 : index
    %c5 = arith.constant 5 : index
    %c0_35 = arith.constant 0 : index
    %45 = vector.load %arg2[%c0_34, %c5, %c0_35] : memref<8x8x28xf32, #tpu.memory_space<vmem>>, vector<8x1x28xf32>
    %46 = vector.shape_cast %45 : vector<8x1x28xf32> to vector<8x28xf32>
    %cst_36 = arith.constant dense<0.000000e+00> : vector<8x128xf32>
    %47 = tpu.matmul %46, %3, %cst_36 {dimension_numbers = #tpu.dot_dimension_numbers<[1], [0], [0], [1], [0, 0, 1, 1], [], []>} : vector<8x28xf32>, vector<28x128xf32>, vector<8x128xf32> -> vector<8x128xf32>
    %48 = vector.broadcast %4 : vector<1x128xf32> to vector<8x128xf32>
    %49 = arith.addf %47, %48 : vector<8x128xf32>
    %c5_37 = arith.constant 5 : index
    %c0_38 = arith.constant 0 : index
    %c0_39 = arith.constant 0 : index
    %50 = vector.load %arg9[%c5_37, %c0_38, %c0_39] : memref<8x8x128xf32, #tpu.memory_space<vmem>>, vector<1x8x128xf32>
    %51 = vector.shape_cast %50 : vector<1x8x128xf32> to vector<8x128xf32>
    %52 = vector.shape_cast %49 : vector<8x128xf32> to vector<1x8x128xf32>
    tpu.vector_store %arg9[%c5_37, %c0_38, %c0_39], %52 {strides = array<i32>} : memref<8x8x128xf32, #tpu.memory_space<vmem>>, vector<1x8x128xf32>,
    %c0_40 = arith.constant 0 : index
    %c6 = arith.constant 6 : index
    %c0_41 = arith.constant 0 : index
    %53 = vector.load %arg2[%c0_40, %c6, %c0_41] : memref<8x8x28xf32, #tpu.memory_space<vmem>>, vector<8x1x28xf32>
    %54 = vector.shape_cast %53 : vector<8x1x28xf32> to vector<8x28xf32>
    %cst_42 = arith.constant dense<0.000000e+00> : vector<8x128xf32>
    %55 = tpu.matmul %54, %3, %cst_42 {dimension_numbers = #tpu.dot_dimension_numbers<[1], [0], [0], [1], [0, 0, 1, 1], [], []>} : vector<8x28xf32>, vector<28x128xf32>, vector<8x128xf32> -> vector<8x128xf32>
    %56 = vector.broadcast %4 : vector<1x128xf32> to vector<8x128xf32>
    %57 = arith.addf %55, %56 : vector<8x128xf32>
    %c6_43 = arith.constant 6 : index
    %c0_44 = arith.constant 0 : index
    %c0_45 = arith.constant 0 : index
    %58 = vector.load %arg9[%c6_43, %c0_44, %c0_45] : memref<8x8x128xf32, #tpu.memory_space<vmem>>, vector<1x8x128xf32>
    %59 = vector.shape_cast %58 : vector<1x8x128xf32> to vector<8x128xf32>
    %60 = vector.shape_cast %57 : vector<8x128xf32> to vector<1x8x128xf32>
    tpu.vector_store %arg9[%c6_43, %c0_44, %c0_45], %60 {strides = array<i32>} : memref<8x8x128xf32, #tpu.memory_space<vmem>>, vector<1x8x128xf32>,
    %c0_46 = arith.constant 0 : index
    %c7 = arith.constant 7 : index
    %c0_47 = arith.constant 0 : index
    %61 = vector.load %arg2[%c0_46, %c7, %c0_47] : memref<8x8x28xf32, #tpu.memory_space<vmem>>, vector<8x1x28xf32>
    %62 = vector.shape_cast %61 : vector<8x1x28xf32> to vector<8x28xf32>
    %cst_48 = arith.constant dense<0.000000e+00> : vector<8x128xf32>
    %63 = tpu.matmul %62, %3, %cst_48 {dimension_numbers = #tpu.dot_dimension_numbers<[1], [0], [0], [1], [0, 0, 1, 1], [], []>} : vector<8x28xf32>, vector<28x128xf32>, vector<8x128xf32> -> vector<8x128xf32>
    %64 = vector.broadcast %4 : vector<1x128xf32> to vector<8x128xf32>
    %65 = arith.addf %63, %64 : vector<8x128xf32>
    %c7_49 = arith.constant 7 : index
    %c0_50 = arith.constant 0 : index
    %c0_51 = arith.constant 0 : index
    %66 = vector.load %arg9[%c7_49, %c0_50, %c0_51] : memref<8x8x128xf32, #tpu.memory_space<vmem>>, vector<1x8x128xf32>
    %67 = vector.shape_cast %66 : vector<1x8x128xf32> to vector<8x128xf32>
    %68 = vector.shape_cast %65 : vector<8x128xf32> to vector<1x8x128xf32>
    tpu.vector_store %arg9[%c7_49, %c0_50, %c0_51], %68 {strides = array<i32>} : memref<8x8x128xf32, #tpu.memory_space<vmem>>, vector<1x8x128xf32>,
    %c0_52 = arith.constant 0 : index
    %c0_53 = arith.constant 0 : index
    %69 = vector.load %arg4[%c0_52, %c0_53] : memref<128x128xf32, #tpu.memory_space<vmem>>, vector<128x128xf32>
    %c0_54 = arith.constant 0 : index
    %c0_55 = arith.constant 0 : index
    %70 = vector.load %arg10[%c0_54, %c0_55] : memref<8x128xf32, #tpu.memory_space<vmem>>, vector<8x128xf32>
    %cst_56 = arith.constant dense<0.000000e+00> : vector<8x128xf32>
    %71 = tpu.matmul %70, %69, %cst_56 {dimension_numbers = #tpu.dot_dimension_numbers<[1], [0], [0], [1], [0, 0, 1, 1], [], []>} : vector<8x128xf32>, vector<128x128xf32>, vector<8x128xf32> -> vector<8x128xf32>
    %c0_57 = arith.constant 0 : index
    %c0_58 = arith.constant 0 : index
    %c0_59 = arith.constant 0 : index
    %72 = vector.load %arg9[%c0_57, %c0_58, %c0_59] : memref<8x8x128xf32, #tpu.memory_space<vmem>>, vector<1x8x128xf32>
    %73 = vector.shape_cast %72 : vector<1x8x128xf32> to vector<8x128xf32>
    %74 = arith.addf %71, %73 : vector<8x128xf32>
    %75 = math.tanh %74 : vector<8x128xf32>
    %cst_60 = arith.constant dense<0.000000e+00> : vector<8x128xf32>
    %76 = tpu.matmul %75, %69, %cst_60 {dimension_numbers = #tpu.dot_dimension_numbers<[1], [0], [0], [1], [0, 0, 1, 1], [], []>} : vector<8x128xf32>, vector<128x128xf32>, vector<8x128xf32> -> vector<8x128xf32>
    %c1_61 = arith.constant 1 : index
    %c0_62 = arith.constant 0 : index
    %c0_63 = arith.constant 0 : index
    %77 = vector.load %arg9[%c1_61, %c0_62, %c0_63] : memref<8x8x128xf32, #tpu.memory_space<vmem>>, vector<1x8x128xf32>
    %78 = vector.shape_cast %77 : vector<1x8x128xf32> to vector<8x128xf32>
    %79 = arith.addf %76, %78 : vector<8x128xf32>
    %80 = math.tanh %79 : vector<8x128xf32>
    %cst_64 = arith.constant dense<0.000000e+00> : vector<8x128xf32>
    %81 = tpu.matmul %80, %69, %cst_64 {dimension_numbers = #tpu.dot_dimension_numbers<[1], [0], [0], [1], [0, 0, 1, 1], [], []>} : vector<8x128xf32>, vector<128x128xf32>, vector<8x128xf32> -> vector<8x128xf32>
    %c2_65 = arith.constant 2 : index
    %c0_66 = arith.constant 0 : index
    %c0_67 = arith.constant 0 : index
    %82 = vector.load %arg9[%c2_65, %c0_66, %c0_67] : memref<8x8x128xf32, #tpu.memory_space<vmem>>, vector<1x8x128xf32>
    %83 = vector.shape_cast %82 : vector<1x8x128xf32> to vector<8x128xf32>
    %84 = arith.addf %81, %83 : vector<8x128xf32>
    %85 = math.tanh %84 : vector<8x128xf32>
    %cst_68 = arith.constant dense<0.000000e+00> : vector<8x128xf32>
    %86 = tpu.matmul %85, %69, %cst_68 {dimension_numbers = #tpu.dot_dimension_numbers<[1], [0], [0], [1], [0, 0, 1, 1], [], []>} : vector<8x128xf32>, vector<128x128xf32>, vector<8x128xf32> -> vector<8x128xf32>
    %c3_69 = arith.constant 3 : index
    %c0_70 = arith.constant 0 : index
    %c0_71 = arith.constant 0 : index
    %87 = vector.load %arg9[%c3_69, %c0_70, %c0_71] : memref<8x8x128xf32, #tpu.memory_space<vmem>>, vector<1x8x128xf32>
    %88 = vector.shape_cast %87 : vector<1x8x128xf32> to vector<8x128xf32>
    %89 = arith.addf %86, %88 : vector<8x128xf32>
    %90 = math.tanh %89 : vector<8x128xf32>
    %cst_72 = arith.constant dense<0.000000e+00> : vector<8x128xf32>
    %91 = tpu.matmul %90, %69, %cst_72 {dimension_numbers = #tpu.dot_dimension_numbers<[1], [0], [0], [1], [0, 0, 1, 1], [], []>} : vector<8x128xf32>, vector<128x128xf32>, vector<8x128xf32> -> vector<8x128xf32>
    %c4_73 = arith.constant 4 : index
    %c0_74 = arith.constant 0 : index
    %c0_75 = arith.constant 0 : index
    %92 = vector.load %arg9[%c4_73, %c0_74, %c0_75] : memref<8x8x128xf32, #tpu.memory_space<vmem>>, vector<1x8x128xf32>
    %93 = vector.shape_cast %92 : vector<1x8x128xf32> to vector<8x128xf32>
    %94 = arith.addf %91, %93 : vector<8x128xf32>
    %95 = math.tanh %94 : vector<8x128xf32>
    %cst_76 = arith.constant dense<0.000000e+00> : vector<8x128xf32>
    %96 = tpu.matmul %95, %69, %cst_76 {dimension_numbers = #tpu.dot_dimension_numbers<[1], [0], [0], [1], [0, 0, 1, 1], [], []>} : vector<8x128xf32>, vector<128x128xf32>, vector<8x128xf32> -> vector<8x128xf32>
    %c5_77 = arith.constant 5 : index
    %c0_78 = arith.constant 0 : index
    %c0_79 = arith.constant 0 : index
    %97 = vector.load %arg9[%c5_77, %c0_78, %c0_79] : memref<8x8x128xf32, #tpu.memory_space<vmem>>, vector<1x8x128xf32>
    %98 = vector.shape_cast %97 : vector<1x8x128xf32> to vector<8x128xf32>
    %99 = arith.addf %96, %98 : vector<8x128xf32>
    %100 = math.tanh %99 : vector<8x128xf32>
    %cst_80 = arith.constant dense<0.000000e+00> : vector<8x128xf32>
    %101 = tpu.matmul %100, %69, %cst_80 {dimension_numbers = #tpu.dot_dimension_numbers<[1], [0], [0], [1], [0, 0, 1, 1], [], []>} : vector<8x128xf32>, vector<128x128xf32>, vector<8x128xf32> -> vector<8x128xf32>
    %c6_81 = arith.constant 6 : index
    %c0_82 = arith.constant 0 : index
    %c0_83 = arith.constant 0 : index
    %102 = vector.load %arg9[%c6_81, %c0_82, %c0_83] : memref<8x8x128xf32, #tpu.memory_space<vmem>>, vector<1x8x128xf32>
    %103 = vector.shape_cast %102 : vector<1x8x128xf32> to vector<8x128xf32>
    %104 = arith.addf %101, %103 : vector<8x128xf32>
    %105 = math.tanh %104 : vector<8x128xf32>
    %cst_84 = arith.constant dense<0.000000e+00> : vector<8x128xf32>
    %106 = tpu.matmul %105, %69, %cst_84 {dimension_numbers = #tpu.dot_dimension_numbers<[1], [0], [0], [1], [0, 0, 1, 1], [], []>} : vector<8x128xf32>, vector<128x128xf32>, vector<8x128xf32> -> vector<8x128xf32>
    %c7_85 = arith.constant 7 : index
    %c0_86 = arith.constant 0 : index
    %c0_87 = arith.constant 0 : index
    %107 = vector.load %arg9[%c7_85, %c0_86, %c0_87] : memref<8x8x128xf32, #tpu.memory_space<vmem>>, vector<1x8x128xf32>
    %108 = vector.shape_cast %107 : vector<1x8x128xf32> to vector<8x128xf32>
    %109 = arith.addf %106, %108 : vector<8x128xf32>
    %110 = math.tanh %109 : vector<8x128xf32>
    %c0_88 = arith.constant 0 : index
    %c0_89 = arith.constant 0 : index
    %111 = vector.load %arg10[%c0_88, %c0_89] : memref<8x128xf32, #tpu.memory_space<vmem>>, vector<8x128xf32>
    tpu.vector_store %arg10[%c0_88, %c0_89], %110 {strides = array<i32>} : memref<8x128xf32, #tpu.memory_space<vmem>>, vector<8x128xf32>,
    %c1_i32 = arith.constant 1 : i32
    %112 = arith.cmpi eq, %arg1, %c1_i32 : i32
    %113 = arith.extui %112 : i1 to i32
    %c0_i32_90 = arith.constant 0 : i32
    %114 = arith.cmpi ne, %113, %c0_i32_90 : i32
    scf.if %114 {
      %c0_91 = arith.constant 0 : index
      %c0_92 = arith.constant 0 : index
      %115 = vector.load %arg6[%c0_91, %c0_92] : memref<128x128xf32, #tpu.memory_space<vmem>>, vector<128x128xf32>
      %cst_93 = arith.constant dense<0.000000e+00> : vector<8x128xf32>
      %116 = tpu.matmul %110, %115, %cst_93 {dimension_numbers = #tpu.dot_dimension_numbers<[1], [0], [0], [1], [0, 0, 1, 1], [], []>} : vector<8x128xf32>, vector<128x128xf32>, vector<8x128xf32> -> vector<8x128xf32>
      %c0_94 = arith.constant 0 : index
      %c0_95 = arith.constant 0 : index
      %117 = vector.load %arg7[%c0_94, %c0_95] : memref<1x128xf32, #tpu.memory_space<vmem>>, vector<1x128xf32>
      %118 = vector.broadcast %117 : vector<1x128xf32> to vector<8x128xf32>
      %119 = arith.addf %116, %118 : vector<8x128xf32>
      %c0_96 = arith.constant 0 : index
      %c0_97 = arith.constant 0 : index
      %120 = vector.load %arg8[%c0_96, %c0_97] : memref<8x128xf32, #tpu.memory_space<vmem>>, vector<8x128xf32>
      tpu.vector_store %arg8[%c0_96, %c0_97], %119 {strides = array<i32>} : memref<8x128xf32, #tpu.memory_space<vmem>>, vector<8x128xf32>,
    } else {
    }
    return
  }
  func.func @transform_0(%arg0: i32, %arg1: i32) -> (i32, i32, i32) {
    %c0_i32 = arith.constant 0 : i32
    %c0_i32_0 = arith.constant 0 : i32
    return %arg0, %arg1, %c0_i32 : i32, i32, i32
  }
  func.func @transform_1(%arg0: i32, %arg1: i32) -> (i32, i32) {
    %c0_i32 = arith.constant 0 : i32
    %c0_i32_0 = arith.constant 0 : i32
    %c0_i32_1 = arith.constant 0 : i32
    return %c0_i32, %c0_i32_0 : i32, i32
  }
  func.func @transform_2(%arg0: i32, %arg1: i32) -> (i32, i32) {
    %c0_i32 = arith.constant 0 : i32
    %c0_i32_0 = arith.constant 0 : i32
    %c0_i32_1 = arith.constant 0 : i32
    return %c0_i32, %c0_i32_0 : i32, i32
  }
  func.func @transform_3(%arg0: i32, %arg1: i32) -> (i32, i32) {
    %c0_i32 = arith.constant 0 : i32
    %c0_i32_0 = arith.constant 0 : i32
    %c0_i32_1 = arith.constant 0 : i32
    return %c0_i32, %c0_i32_0 : i32, i32
  }
  func.func @transform_4(%arg0: i32, %arg1: i32) -> (i32, i32) {
    %c0_i32 = arith.constant 0 : i32
    %c0_i32_0 = arith.constant 0 : i32
    %c0_i32_1 = arith.constant 0 : i32
    return %c0_i32, %c0_i32_0 : i32, i32
  }
  func.func @transform_5(%arg0: i32, %arg1: i32) -> (i32, i32) {
    %c0_i32 = arith.constant 0 : i32
    %c0_i32_0 = arith.constant 0 : i32
    %c0_i32_1 = arith.constant 0 : i32
    return %c0_i32, %c0_i32_0 : i32, i32
  }
  func.func @transform_6(%arg0: i32, %arg1: i32) -> (i32, i32) {
    %c0_i32 = arith.constant 0 : i32
    %c0_i32_0 = arith.constant 0 : i32
    return %arg0, %c0_i32 : i32, i32
  }
}

</mosaic_0001>

<llo_original>
// kernel: tpu_custom_call.1
$region0: #{tpu_custom_call.1}
  #allocation0 [shape = 'u32[]', space=smem, size = 0x4, offset = 0x4, fixed_abs, tag = 'smem constant byte address 0x4 - core index']
  #allocation1 [shape = 'u32[144,128]{1,0:T(1,128)}', space=vmem, size = 0x12000, scoped, tag = 'internal scratch']
  #allocation2 [shape = 'f32[8,8,128]{2,1,0:T(8,128)}', space=vmem, size = 0x8000, scoped, tag = 'scratch operand']
  #allocation3 [shape = 'f32[8,128]{1,0:T(8,128)}', space=vmem, size = 0x1000, scoped, tag = 'scratch operand']
  %s0 = inlined_call_operand.hbm [shape: f32[16,16,28], index: 0, kind: input, shape index: {}]
  %s1 = inlined_call_operand.hbm [shape: f32[28,128], index: 1, kind: input, shape index: {}]
  %s2 = inlined_call_operand.hbm [shape: f32[128,128], index: 2, kind: input, shape index: {}]
  %s3 = inlined_call_operand.vmem [shape: f32[1,128], index: 3, kind: input, shape index: {}]
  %s4 = inlined_call_operand.hbm [shape: f32[128,128], index: 4, kind: input, shape index: {}]
  %s5 = inlined_call_operand.vmem [shape: f32[1,128], index: 5, kind: input, shape index: {}]
  %s6 = inlined_call_operand.hbm [shape: f32[16,128], index: 6, kind: output, shape index: {}]
  %s7 = sld [smem:[#allocation0]]
  $region81: #{tpu_custom_call.1} parent=0
    _
  %s9 = ssub.s32 1, %s7
  %s10 = scalar_select 0, %s9, %s7
  $region1: #{tpu_custom_call.1} parent=0
    #allocation4 [shape = 'u8[65536]{0}', space=vmem, size = 0x10000, scoped, tag = 'input window, operand 0']
    #allocation5 [shape = 's32[2]{0}', space=sflag, size = 0x8, scoped, tag = 'scoped memory for tpu_custom_call.1']
    #allocation6 [shape = 's32[2]{0}', space=sflag, size = 0x8, scoped, tag = 'scoped memory for tpu_custom_call.1']
    #allocation7 [shape = 'u8[16384]{0}', space=vmem, size = 0x4000, scoped, tag = 'input window, operand 1, single buffered']
    #allocation8 [shape = 's32[1]{0}', space=sflag, size = 0x4, scoped, tag = 'scoped memory for tpu_custom_call.1']
    #allocation9 [shape = 'u8[65536]{0}', space=vmem, size = 0x10000, scoped, tag = 'input window, operand 2, single buffered']
    #allocation10 [shape = 'u8[65536]{0}', space=vmem, size = 0x10000, scoped, tag = 'input window, operand 4, single buffered']
    #allocation11 [shape = 's32[1]{0}', space=sflag, size = 0x4, scoped, tag = 'scoped memory for tpu_custom_call.1']
    #allocation12 [shape = 'u8[8192]{0}', space=vmem, size = 0x2000, scoped, tag = 'output window, operand 0']
    %11 = vsyncpa [#allocation5], 0
    %s12 = scalar_lea.sflag [#allocation5], 1
    %13 = vsyncpa %s12, 0
    %14 = vsyncpa [#allocation8], 0
    %15 = vsyncpa [#allocation11], 0
    %16 = vsyncpa [#allocation6], 0
    %s17 = scalar_lea.sflag [#allocation6], 1
    %18 = vsyncpa %s17, 0
    loop: start=0, step=1, limit=6
    $region2: #{tpu_custom_call.1} parent=1 // loop_pre_header
      _
    $region3: #{tpu_custom_call.1} parent=1 // loop_header
      %s20 = sphi 0, %s24
      %p21 = scmp.ge.s32.totalorder %s20, 6
      %s27 = sphi 0, %s39
      %s28 = sphi 0, %s35
      %s29 = sphi 0, %s27
      %s30 = sphi 0, %s28
      %s31 = sphi 0, %s29
      %s32 = sphi 0, %s30
      %s44 = sphi 0, %s46
      %s47 = sphi 0, %s44
      %s48 = sphi 0, %s47
      %s64 = sphi 0, %s48
      %s68 = sphi 0, %s68
      %s70 = sphi 0, %s68
      %s71 = sphi 0, %s70
      %s85 = sphi 0, %s71
      %s89 = sphi 0, %s89
      %s91 = sphi 0, %s89
      %s92 = sphi 0, %s91
      %s106 = sphi 0, %s92
      %s110 = sphi 0, %s110
      %s112 = sphi 0, %s110
      %s113 = sphi 0, %s112
      %s127 = sphi 0, %s113
      %s131 = sphi 0, %s131
      %s133 = sphi 0, %s131
      %s134 = sphi 0, %s133
      %s148 = sphi 0, %s134
      %s152 = sphi 0, %s152
      %s154 = sphi 0, %s152
      %s155 = sphi 0, %s154
      %s169 = sphi 0, %s155
      %s175 = sphi 0, %s177
      %s178 = sphi 0, %s175
      %s179 = sphi 0, %s178
      %s195 = sphi 0, %s179
    $region4: #{tpu_custom_call.1} parent=1 // loop_header_branch
      %23 = sbr.rel (%p21) target = $region8
    $region5: #{tpu_custom_call.1} parent=1 // loop_body
      %s25 = ssub.s32 %s20, 1
      %s26 = ssub.s32 %s20, 2
      %s33 = sadd.s32 1, %s28
      %p34 = scmp.ge.s32.totalorder %s33, 2
      %s35 = scalar_select %p34, 0, %s33
      %s36 = sadd.s32 1, %s27
      %s37 = scalar_select %p34, %s36, %s27
      %p38 = scmp.ge.s32.totalorder %s37, 2
      %s39 = scalar_select %p38, 0, %s37
      %s40 = ssub.s32 %s27, %s39
      %s41 = ssub.s32 %s28, %s35
      %s42 = sor.u32 %s40, %s41
      %p43 = scmp.eq.s32.totalorder %s42, 0
      %s45 = sadd.s32 %s44, 1
      %s46 = scalar_select %p43, %s44, %s45
      %p49 = pneg %p43
      %p50 = scmp.eq.s32.totalorder %s20, 3
      %p51 = por %p49, %p50
      %p52 = scmp.ne.s32.totalorder %s44, %s47
      %p53 = scmp.eq.s32.totalorder %s20, 0
      %p54 = por %p52, %p53
      %p55 = scmp.ne.s32.totalorder %s44, %s47
      %p56 = scmp.eq.s32.totalorder %s25, 3
      %p57 = por %p55, %p56
      %p58 = scmp.ne.s32.totalorder %s47, %s48
      %p59 = scmp.eq.s32.totalorder %s25, 0
      %p60 = por %p58, %p59
      %p61 = scmp.ne.s32.totalorder %s47, %s48
      %p62 = scmp.eq.s32.totalorder %s26, 3
      %p63 = por %p61, %p62
      %p65 = scmp.ne.s32.totalorder %s48, %s64
      %p66 = scmp.eq.s32.totalorder %s26, 0
      %p67 = por %p65, %p66
      %s69 = sadd.s32 %s68, 1
      %p72 = scmp.eq.s32.totalorder %s20, 3
      %p73 = scmp.ne.s32.totalorder %s68, %s70
      %p74 = scmp.eq.s32.totalorder %s20, 0
      %p75 = por %p73, %p74
      %p76 = scmp.ne.s32.totalorder %s68, %s70
      %p77 = scmp.eq.s32.totalorder %s25, 3
      %p78 = por %p76, %p77
      %p79 = scmp.ne.s32.totalorder %s70, %s71
      %p80 = scmp.eq.s32.totalorder %s25, 0
      %p81 = por %p79, %p80
      %p82 = scmp.ne.s32.totalorder %s70, %s71
      %p83 = scmp.eq.s32.totalorder %s26, 3
      %p84 = por %p82, %p83
      %p86 = scmp.ne.s32.totalorder %s71, %s85
      %p87 = scmp.eq.s32.totalorder %s26, 0
      %p88 = por %p86, %p87
      %s90 = sadd.s32 %s89, 1
      %p93 = scmp.eq.s32.totalorder %s20, 3
      %p94 = scmp.ne.s32.totalorder %s89, %s91
      %p95 = scmp.eq.s32.totalorder %s20, 0
      %p96 = por %p94, %p95
      %p97 = scmp.ne.s32.totalorder %s89, %s91
      %p98 = scmp.eq.s32.totalorder %s25, 3
      %p99 = por %p97, %p98
      %p100 = scmp.ne.s32.totalorder %s91, %s92
      %p101 = scmp.eq.s32.totalorder %s25, 0
      %p102 = por %p100, %p101
      %p103 = scmp.ne.s32.totalorder %s91, %s92
      %p104 = scmp.eq.s32.totalorder %s26, 3
      %p105 = por %p103, %p104
      %p107 = scmp.ne.s32.totalorder %s92, %s106
      %p108 = scmp.eq.s32.totalorder %s26, 0
      %p109 = por %p107, %p108
      %s111 = sadd.s32 %s110, 1
      %p114 = scmp.eq.s32.totalorder %s20, 3
      %p115 = scmp.ne.s32.totalorder %s110, %s112
      %p116 = scmp.eq.s32.totalorder %s20, 0
      %p117 = por %p115, %p116
      %p118 = scmp.ne.s32.totalorder %s110, %s112
      %p119 = scmp.eq.s32.totalorder %s25, 3
      %p120 = por %p118, %p119
      %p121 = scmp.ne.s32.totalorder %s112, %s113
      %p122 = scmp.eq.s32.totalorder %s25, 0
      %p123 = por %p121, %p122
      %p124 = scmp.ne.s32.totalorder %s112, %s113
      %p125 = scmp.eq.s32.totalorder %s26, 3
      %p126 = por %p124, %p125
      %p128 = scmp.ne.s32.totalorder %s113, %s127
      %p129 = scmp.eq.s32.totalorder %s26, 0
      %p130 = por %p128, %p129
      %s132 = sadd.s32 %s131, 1
      %p135 = scmp.eq.s32.totalorder %s20, 3
      %p136 = scmp.ne.s32.totalorder %s131, %s133
      %p137 = scmp.eq.s32.totalorder %s20, 0
      %p138 = por %p136, %p137
      %p139 = scmp.ne.s32.totalorder %s131, %s133
      %p140 = scmp.eq.s32.totalorder %s25, 3
      %p141 = por %p139, %p140
      %p142 = scmp.ne.s32.totalorder %s133, %s134
      %p143 = scmp.eq.s32.totalorder %s25, 0
      %p144 = por %p142, %p143
      %p145 = scmp.ne.s32.totalorder %s133, %s134
      %p146 = scmp.eq.s32.totalorder %s26, 3
      %p147 = por %p145, %p146
      %p149 = scmp.ne.s32.totalorder %s134, %s148
      %p150 = scmp.eq.s32.totalorder %s26, 0
      %p151 = por %p149, %p150
      %s153 = sadd.s32 %s152, 1
      %p156 = scmp.eq.s32.totalorder %s20, 3
      %p157 = scmp.ne.s32.totalorder %s152, %s154
      %p158 = scmp.eq.s32.totalorder %s20, 0
      %p159 = por %p157, %p158
      %p160 = scmp.ne.s32.totalorder %s152, %s154
      %p161 = scmp.eq.s32.totalorder %s25, 3
      %p162 = por %p160, %p161
      %p163 = scmp.ne.s32.totalorder %s154, %s155
      %p164 = scmp.eq.s32.totalorder %s25, 0
      %p165 = por %p163, %p164
      %p166 = scmp.ne.s32.totalorder %s154, %s155
      %p167 = scmp.eq.s32.totalorder %s26, 3
      %p168 = por %p166, %p167
      %p170 = scmp.ne.s32.totalorder %s155, %s169
      %p171 = scmp.eq.s32.totalorder %s26, 0
      %p172 = por %p170, %p171
      %s173 = ssub.s32 %s27, %s39
      %p174 = scmp.eq.s32.totalorder %s173, 0
      %s176 = sadd.s32 %s175, 1
      %s177 = scalar_select %p174, %s175, %s176
      %p180 = pneg %p174
      %p181 = scmp.eq.s32.totalorder %s20, 3
      %p182 = por %p180, %p181
      %p183 = scmp.ne.s32.totalorder %s175, %s178
      %p184 = scmp.eq.s32.totalorder %s20, 0
      %p185 = por %p183, %p184
      %p186 = scmp.ne.s32.totalorder %s175, %s178
      %p187 = scmp.eq.s32.totalorder %s25, 3
      %p188 = por %p186, %p187
      %p189 = scmp.ne.s32.totalorder %s178, %s179
      %p190 = scmp.eq.s32.totalorder %s25, 0
      %p191 = por %p189, %p190
      %p192 = scmp.ne.s32.totalorder %s178, %s179
      %p193 = scmp.eq.s32.totalorder %s26, 3
      %p194 = por %p192, %p193
      %p196 = scmp.ne.s32.totalorder %s179, %s195
      %p197 = scmp.eq.s32.totalorder %s26, 0
      %p198 = por %p196, %p197
      %p199 = scmp.le.s32.totalorder 1, %s20
      %p200 = scmp.lt.s32.totalorder %s20, 5
      %p201 = pnand %p199, %p200
      %p202 = pneg %p201
      // Predicated region
      $region9: #{tpu_custom_call.1} parent=5 // pred_check
        _
      $region10: #{tpu_custom_call.1} parent=5 // pred_check_branch
        %204 = sbr.rel (%p201) target = $region12
      $region11: #{tpu_custom_call.1} parent=5 // pred_region
        %s205 = ssub.s32 %s20, 1
        // Predicated region
        $region13: #{tpu_custom_call.1} parent=11 // pred_check
          %p206 = pneg %p81
        $region14: #{tpu_custom_call.1} parent=11 // pred_check_branch
          %208 = sbr.rel (%p206) target = $region16
        $region15: #{tpu_custom_call.1} parent=11 // pred_region
          %s210 = ssub.s32 512, 512
          %211 = vsyncadd [#allocation8], %s210
          %s212 = sshll.u32 [#allocation7], 4
          %s213 = int_to_ptr.vmem [resolvable:$true] %s212
          %218 = dma.hbm_to_vmem [thread:$0]  %s1, 512, %s213, [#allocation8], 128, 128, 8
        $region16: #{tpu_custom_call.1} parent=11 // pred_fallthru
          _
        // Predicated region
        $region17: #{tpu_custom_call.1} parent=11 // pred_check
          %p219 = pneg %p102
        $region18: #{tpu_custom_call.1} parent=11 // pred_check_branch
          %221 = sbr.rel (%p219) target = $region20
        $region19: #{tpu_custom_call.1} parent=11 // pred_region
          %s223 = ssub.s32 2048, 2048
          %224 = vsyncadd [#allocation8], %s223
          %s225 = sshll.u32 [#allocation9], 4
          %s226 = int_to_ptr.vmem [resolvable:$true] %s225
          %231 = dma.hbm_to_vmem [thread:$0]  %s2, 2048, %s226, [#allocation8], 128, 128, 8
        $region20: #{tpu_custom_call.1} parent=11 // pred_fallthru
          _
        // Predicated region
        $region21: #{tpu_custom_call.1} parent=11 // pred_check
          %p232 = pneg %p123
        $region22: #{tpu_custom_call.1} parent=11 // pred_check_branch
          %234 = sbr.rel (%p232) target = $region24
        $region23: #{tpu_custom_call.1} parent=11 // pred_region
          _
        $region24: #{tpu_custom_call.1} parent=11 // pred_fallthru
          _
        // Predicated region
        $region25: #{tpu_custom_call.1} parent=11 // pred_check
          %p235 = pneg %p144
        $region26: #{tpu_custom_call.1} parent=11 // pred_check_branch
          %237 = sbr.rel (%p235) target = $region28
        $region27: #{tpu_custom_call.1} parent=11 // pred_region
          %s239 = ssub.s32 2048, 2048
          %240 = vsyncadd [#allocation11], %s239
          %s241 = sshll.u32 [#allocation10], 4
          %s242 = int_to_ptr.vmem [resolvable:$true] %s241
          %247 = dma.hbm_to_vmem [thread:$0]  %s4, 2048, %s242, [#allocation11], 128, 128, 8
        $region28: #{tpu_custom_call.1} parent=11 // pred_fallthru
          _
        // Predicated region
        $region29: #{tpu_custom_call.1} parent=11 // pred_check
          %p248 = pneg %p165
        $region30: #{tpu_custom_call.1} parent=11 // pred_check_branch
          %250 = sbr.rel (%p248) target = $region32
        $region31: #{tpu_custom_call.1} parent=11 // pred_region
          _
        $region32: #{tpu_custom_call.1} parent=11 // pred_fallthru
          _
      $region12: #{tpu_custom_call.1} parent=5 // pred_fallthru
        _
      %p251 = scmp.lt.s32.totalorder %s20, 4
      // Predicated region
      $region33: #{tpu_custom_call.1} parent=5 // pred_check
        %p252 = pneg %p251
      $region34: #{tpu_custom_call.1} parent=5 // pred_check_branch
        %254 = sbr.rel (%p252) target = $region36
      $region35: #{tpu_custom_call.1} parent=5 // pred_region
        // Predicated region
        $region37: #{tpu_custom_call.1} parent=35 // pred_check
          %p255 = pneg %p54
        $region38: #{tpu_custom_call.1} parent=35 // pred_check_branch
          %257 = sbr.rel (%p255) target = $region40
        $region39: #{tpu_custom_call.1} parent=35 // pred_region
          %s258 = sand.u32 %s44, 1
          %s259 = scalar_lea.sflag [#allocation5], %s258
          %s260 = sand.u32 %s44, 1
          %s261 = smul.addr %s260, 64
          %s262 = scalar_lea.vmem [#allocation4], %s261
          %s263 = smul.u32 8, %s27
          %s265 = ssub.s32 1024, 1024
          %266 = vsyncadd %s259, %s265
          %s267 = smul.addr %s263, 2
          %s268 = sadd.s32 %s28, %s267
          %s269 = smul.addr %s268, 128
          %s270 = scalar_lea.hbm %s0, %s269
          %s271 = sshll.u32 %s262, 4
          %s272 = int_to_ptr.vmem [resolvable:$true] %s271
          %277 = dma.hbm_to_vmem [thread:$0]  %s270, 1024, %s272, %s259, 256, 128, 8
        $region40: #{tpu_custom_call.1} parent=35 // pred_fallthru
          _
      $region36: #{tpu_custom_call.1} parent=5 // pred_fallthru
        _
      %p278 = scmp.le.s32.totalorder 1, %s20
      %p279 = scmp.lt.s32.totalorder %s20, 5
      %p280 = pnand %p278, %p279
      %p281 = pneg %p280
      // Predicated region
      $region41: #{tpu_custom_call.1} parent=5 // pred_check
        _
      $region42: #{tpu_custom_call.1} parent=5 // pred_check_branch
        %283 = sbr.rel (%p280) target = $region44
      $region43: #{tpu_custom_call.1} parent=5 // pred_region
        %s284 = ssub.s32 %s20, 1
        %s285 = sand.u32 %s47, 1
        %s286 = scalar_lea.sflag [#allocation5], %s285
        %s287 = sand.u32 %s47, 1
        %s288 = smul.addr %s287, 64
        %s289 = scalar_lea.vmem [#allocation4], %s288
        // Predicated region
        $region45: #{tpu_custom_call.1} parent=43 // pred_check
          %p290 = pneg %p60
        $region46: #{tpu_custom_call.1} parent=43 // pred_check_branch
          %292 = sbr.rel (%p290) target = $region48
        $region47: #{tpu_custom_call.1} parent=43 // pred_region
          %293 = dma.done %s286, 1024
        $region48: #{tpu_custom_call.1} parent=43 // pred_fallthru
          _
        // Predicated region
        $region49: #{tpu_custom_call.1} parent=43 // pred_check
          %p294 = pneg %p81
        $region50: #{tpu_custom_call.1} parent=43 // pred_check_branch
          %296 = sbr.rel (%p294) target = $region52
        $region51: #{tpu_custom_call.1} parent=43 // pred_region
          %297 = dma.done [#allocation8], 512
        $region52: #{tpu_custom_call.1} parent=43 // pred_fallthru
          _
        // Predicated region
        $region53: #{tpu_custom_call.1} parent=43 // pred_check
          %p298 = pneg %p102
        $region54: #{tpu_custom_call.1} parent=43 // pred_check_branch
          %300 = sbr.rel (%p298) target = $region56
        $region55: #{tpu_custom_call.1} parent=43 // pred_region
          %301 = dma.done [#allocation8], 2048
        $region56: #{tpu_custom_call.1} parent=43 // pred_fallthru
          _
        // Predicated region
        $region57: #{tpu_custom_call.1} parent=43 // pred_check
          %p302 = pneg %p144
        $region58: #{tpu_custom_call.1} parent=43 // pred_check_branch
          %304 = sbr.rel (%p302) target = $region60
        $region59: #{tpu_custom_call.1} parent=43 // pred_region
          %305 = dma.done [#allocation11], 2048
        $region60: #{tpu_custom_call.1} parent=43 // pred_fallthru
          _
        %s306 = sand.u32 %s47, 1
        %s307 = scalar_lea.sflag [#allocation5], %s306
        %s308 = sand.u32 %s47, 1
        %s309 = smul.addr %s308, 64
        %s310 = scalar_lea.vmem [#allocation4], %s309
        %p311 = pneg %p60
        %p312 = pneg %p57
        %p313 = pneg %p81
        %p314 = pneg %p78
        %p315 = pneg %p102
        %p316 = pneg %p99
        %p317 = pneg %p123
        %p318 = pneg %p120
        %p319 = pneg %p144
        %p320 = pneg %p141
        %p321 = pneg %p165
        %p322 = pneg %p162
        %p323 = pneg %p191
        %p324 = pneg %p188
        %s325 = sand.u32 %s178, 1
        %s326 = scalar_lea.sflag [#allocation6], %s325
        %s327 = sand.u32 %s178, 1
        %s328 = smul.addr %s327, 8
        %s329 = scalar_lea.vmem [#allocation12], %s328
        %s330 = smul.u32 8, %s29
        %p331 = scmp.eq.s32.totalorder %s30, 0
        // Predicated region
        $region61: #{tpu_custom_call.1} parent=43 // pred_check
          %p332 = pneg %p331
        $region62: #{tpu_custom_call.1} parent=43 // pred_check_branch
          %334 = sbr.rel (%p332) target = $region64
        $region63: #{tpu_custom_call.1} parent=43 // pred_region
          %335 = vst [vmem:[#allocation3] sm:$0xff] 0.0
        $region64: #{tpu_custom_call.1} parent=43 // pred_fallthru
          _
        %v336 = vld [vmem:[#allocation7] sm:$0xff]
        %v337 = vld [vmem:[#allocation7 + $0x8] sm:$0xff]
        %v338 = vld [vmem:[#allocation7 + $0x10] sm:$0xff]
        %v339 = vld [vmem:[#allocation7 + $0x18] sm:$0xf]
        %v340 = vld [vmem:[%s3] sm:$0x1]
        %v341 = vld [vmem:[%s289] sm:$0x1]
        %v342 = vld [vmem:[%s289 + $0x8] sm:$0x1]
        %v343 = vld [vmem:[%s289 + $0x10] sm:$0x1]
        %v344 = vld [vmem:[%s289 + $0x18] sm:$0x1]
        %v345 = vld [vmem:[%s289 + $0x20] sm:$0x1]
        %v346 = vld [vmem:[%s289 + $0x28] sm:$0x1]
        %v347 = vld [vmem:[%s289 + $0x30] sm:$0x1]
        %v348 = vld [vmem:[%s289 + $0x38] sm:$0x1]
        %v350 = vlaneseq
        %v351 = vshrl.u32 %v350, 7
        %v352 = vsub.s32 0, %v351
        %v353 = vrot.slane %v340, %v352
        %v363 = vrot.slane %v342, 7
        %vm364 = vcmask 1041409
        %v365 = vsel %vm364, %v363, %v341
        %v366 = vrot.slane %v343, 6
        %vm367 = vcmask 1042434
        %v368 = vsel %vm367, %v366, %v365
        %v369 = vrot.slane %v344, 5
        %vm370 = vcmask 1043459
        %v371 = vsel %vm370, %v369, %v368
        %v372 = vrot.slane %v345, 4
        %vm373 = vcmask 1044484
        %v374 = vsel %vm373, %v372, %v371
        %v375 = vrot.slane %v346, 3
        %vm376 = vcmask 1045509
        %v377 = vsel %vm376, %v375, %v374
        %v378 = vrot.slane %v347, 2
        %vm379 = vcmask 1046534
        %v380 = vsel %vm379, %v378, %v377
        %v381 = vrot.slane %v348, 1
        %vm382 = vcmask 1047559
        %v383 = vsel %vm382, %v381, %v380
        %vm384 = vcmask 228352
        %v385 = vsel %vm384, %v383, 0
        %vm387 = vcmask 1043456
        %v389 = vsel %vm387, %v339, 0
        %391 = vmatprep.subr.mxu0 0.0
        %392 = vmatpush1.msra.mxu0 0.0
        %393 = vmatprep.subr.mxu0 0.0
        %394 = vmatpush1.msra.mxu0 0.0
        %395 = vmatprep.subr.mxu0 0.0
        %396 = vmatpush1.msra.mxu0 0.0
        %397 = vmatprep.subr.mxu0 0.0
        %398 = vmatpush1.msra.mxu0 0.0
        %399 = vmatprep.subr.mxu0 0.0
        %400 = vmatpush1.msra.mxu0 0.0
        %401 = vmatprep.subr.mxu0 0.0
        %402 = vmatpush1.msra.mxu0 0.0
        %403 = vmatprep.subr.mxu0 0.0
        %404 = vmatpush1.msra.mxu0 0.0
        %405 = vmatprep.subr.mxu0 0.0
        %406 = vmatpush1.msra.mxu0 0.0
        %407 = vmatprep.subr.mxu0 0.0
        %408 = vmatpush1.msra.mxu0 0.0
        %409 = vmatprep.subr.mxu0 0.0
        %410 = vmatpush1.msra.mxu0 0.0
        %411 = vmatprep.subr.mxu0 0.0
        %412 = vmatpush1.msra.mxu0 0.0
        %413 = vmatprep.subr.mxu0 0.0
        %414 = vmatpush1.msra.mxu0 0.0
        %415 = vmatprep.subr.mxu0 0.0
        %416 = vmatpush1.msra.mxu0 %v389
        %417 = vmatprep.subr.mxu0 0.0
        %418 = vmatpush1.msra.mxu0 %v338
        %419 = vmatprep.subr.mxu0 0.0
        %420 = vmatpush1.msra.mxu0 %v337
        %421 = vmatprep.subr.mxu0 0.0
        %422 = vmatpush1.msra.mxu0 %v336
        %423 = vmatprep.subr.mxu0 0.0
        %424 = vmatpush2.msra.mxu0 0.0
        %425 = vmatprep.subr.mxu0 0.0
        %426 = vmatpush2.msra.mxu0 0.0
        %427 = vmatprep.subr.mxu0 0.0
        %428 = vmatpush2.msra.mxu0 0.0
        %429 = vmatprep.subr.mxu0 0.0
        %430 = vmatpush2.msra.mxu0 0.0
        %431 = vmatprep.subr.mxu0 0.0
        %432 = vmatpush2.msra.mxu0 0.0
        %433 = vmatprep.subr.mxu0 0.0
        %434 = vmatpush2.msra.mxu0 0.0
        %435 = vmatprep.subr.mxu0 0.0
        %436 = vmatpush2.msra.mxu0 0.0
        %437 = vmatprep.subr.mxu0 0.0
        %438 = vmatpush2.msra.mxu0 0.0
        %439 = vmatprep.subr.mxu0 0.0
        %440 = vmatpush2.msra.mxu0 0.0
        %441 = vmatprep.subr.mxu0 0.0
        %442 = vmatpush2.msra.mxu0 0.0
        %443 = vmatprep.subr.mxu0 0.0
        %444 = vmatpush2.msra.mxu0 0.0
        %445 = vmatprep.subr.mxu0 0.0
        %446 = vmatpush2.msra.mxu0 0.0
        %447 = vmatprep.subr.mxu0 0.0
        %448 = vmatpush2.msra.mxu0 0.0
        %449 = vmatprep.subr.mxu0 0.0
        %450 = vmatpush2.msra.mxu0 0.0
        %451 = vmatprep.subr.mxu0 0.0
        %452 = vmatpush2.msra.mxu0 0.0
        %453 = vmatprep.subr.mxu0 0.0
        %454 = vmatpush2.msra.mxu0 0.0
        %455 = vmatprep.mubr.f32.mxu0 0.0
        %456 = vmatmul.mubr.f32.gmra.mxu0 %v385
        %v457 = vpop.f32.mrf.mxu0
        %v458 = vadd.f32 %v353, %v457
        %v459 = vpop.f32.mrf.mxu0
        %460 = vdwg.mxu0
        %461 = vst [vmem:[#allocation2] sm:$0xff] %v458
        %v462 = vld [vmem:[%s289 + $0x1] sm:$0x1]
        %v463 = vld [vmem:[%s289 + $0x9] sm:$0x1]
        %v464 = vld [vmem:[%s289 + $0x11] sm:$0x1]
        %v465 = vld [vmem:[%s289 + $0x19] sm:$0x1]
        %v466 = vld [vmem:[%s289 + $0x21] sm:$0x1]
        %v467 = vld [vmem:[%s289 + $0x29] sm:$0x1]
        %v468 = vld [vmem:[%s289 + $0x31] sm:$0x1]
        %v469 = vld [vmem:[%s289 + $0x39] sm:$0x1]
        %v478 = vrot.slane %v463, 7
        %v479 = vsel %vm364, %v478, %v462
        %v480 = vrot.slane %v464, 6
        %v481 = vsel %vm367, %v480, %v479
        %v482 = vrot.slane %v465, 5
        %v483 = vsel %vm370, %v482, %v481
        %v484 = vrot.slane %v466, 4
        %v485 = vsel %vm373, %v484, %v483
        %v486 = vrot.slane %v467, 3
        %v487 = vsel %vm376, %v486, %v485
        %v488 = vrot.slane %v468, 2
        %v489 = vsel %vm379, %v488, %v487
        %v490 = vrot.slane %v469, 1
        %v491 = vsel %vm382, %v490, %v489
        %v492 = vsel %vm384, %v491, 0
        %494 = vmatprep.subr.mxu0 0.0
        %495 = vmatpush1.msra.mxu0 0.0
        %496 = vmatprep.subr.mxu0 0.0
        %497 = vmatpush1.msra.mxu0 0.0
        %498 = vmatprep.subr.mxu0 0.0
        %499 = vmatpush1.msra.mxu0 0.0
        %500 = vmatprep.subr.mxu0 0.0
        %501 = vmatpush1.msra.mxu0 0.0
        %502 = vmatprep.subr.mxu0 0.0
        %503 = vmatpush1.msra.mxu0 0.0
        %504 = vmatprep.subr.mxu0 0.0
        %505 = vmatpush1.msra.mxu0 0.0
        %506 = vmatprep.subr.mxu0 0.0
        %507 = vmatpush1.msra.mxu0 0.0
        %508 = vmatprep.subr.mxu0 0.0
        %509 = vmatpush1.msra.mxu0 0.0
        %510 = vmatprep.subr.mxu0 0.0
        %511 = vmatpush1.msra.mxu0 0.0
        %512 = vmatprep.subr.mxu0 0.0
        %513 = vmatpush1.msra.mxu0 0.0
        %514 = vmatprep.subr.mxu0 0.0
        %515 = vmatpush1.msra.mxu0 0.0
        %516 = vmatprep.subr.mxu0 0.0
        %517 = vmatpush1.msra.mxu0 0.0
        %518 = vmatprep.subr.mxu0 0.0
        %519 = vmatpush1.msra.mxu0 %v389
        %520 = vmatprep.subr.mxu0 0.0
        %521 = vmatpush1.msra.mxu0 %v338
        %522 = vmatprep.subr.mxu0 0.0
        %523 = vmatpush1.msra.mxu0 %v337
        %524 = vmatprep.subr.mxu0 0.0
        %525 = vmatpush1.msra.mxu0 %v336
        %526 = vmatprep.subr.mxu0 0.0
        %527 = vmatpush2.msra.mxu0 0.0
        %528 = vmatprep.subr.mxu0 0.0
        %529 = vmatpush2.msra.mxu0 0.0
        %530 = vmatprep.subr.mxu0 0.0
        %531 = vmatpush2.msra.mxu0 0.0
        %532 = vmatprep.subr.mxu0 0.0
        %533 = vmatpush2.msra.mxu0 0.0
        %534 = vmatprep.subr.mxu0 0.0
        %535 = vmatpush2.msra.mxu0 0.0
        %536 = vmatprep.subr.mxu0 0.0
        %537 = vmatpush2.msra.mxu0 0.0
        %538 = vmatprep.subr.mxu0 0.0
        %539 = vmatpush2.msra.mxu0 0.0
        %540 = vmatprep.subr.mxu0 0.0
        %541 = vmatpush2.msra.mxu0 0.0
        %542 = vmatprep.subr.mxu0 0.0
        %543 = vmatpush2.msra.mxu0 0.0
        %544 = vmatprep.subr.mxu0 0.0
        %545 = vmatpush2.msra.mxu0 0.0
        %546 = vmatprep.subr.mxu0 0.0
        %547 = vmatpush2.msra.mxu0 0.0
        %548 = vmatprep.subr.mxu0 0.0
        %549 = vmatpush2.msra.mxu0 0.0
        %550 = vmatprep.subr.mxu0 0.0
        %551 = vmatpush2.msra.mxu0 0.0
        %552 = vmatprep.subr.mxu0 0.0
        %553 = vmatpush2.msra.mxu0 0.0
        %554 = vmatprep.subr.mxu0 0.0
        %555 = vmatpush2.msra.mxu0 0.0
        %556 = vmatprep.subr.mxu0 0.0
        %557 = vmatpush2.msra.mxu0 0.0
        %558 = vmatprep.mubr.f32.mxu0 0.0
        %559 = vmatmul.mubr.f32.gmra.mxu0 %v492
        %v560 = vpop.f32.mrf.mxu0
        %v561 = vadd.f32 %v353, %v560
        %v562 = vpop.f32.mrf.mxu0
        %563 = vdwg.mxu0
        %s564 = scalar_lea.vmem [#allocation2], 8
        %565 = vst [vmem:[%s564] sm:$0xff] %v561
        %v566 = vld [vmem:[%s289 + $0x2] sm:$0x1]
        %v567 = vld [vmem:[%s289 + $0xa] sm:$0x1]
        %v568 = vld [vmem:[%s289 + $0x12] sm:$0x1]
        %v569 = vld [vmem:[%s289 + $0x1a] sm:$0x1]
        %v570 = vld [vmem:[%s289 + $0x22] sm:$0x1]
        %v571 = vld [vmem:[%s289 + $0x2a] sm:$0x1]
        %v572 = vld [vmem:[%s289 + $0x32] sm:$0x1]
        %v573 = vld [vmem:[%s289 + $0x3a] sm:$0x1]
        %v582 = vrot.slane %v567, 7
        %v583 = vsel %vm364, %v582, %v566
        %v584 = vrot.slane %v568, 6
        %v585 = vsel %vm367, %v584, %v583
        %v586 = vrot.slane %v569, 5
        %v587 = vsel %vm370, %v586, %v585
        %v588 = vrot.slane %v570, 4
        %v589 = vsel %vm373, %v588, %v587
        %v590 = vrot.slane %v571, 3
        %v591 = vsel %vm376, %v590, %v589
        %v592 = vrot.slane %v572, 2
        %v593 = vsel %vm379, %v592, %v591
        %v594 = vrot.slane %v573, 1
        %v595 = vsel %vm382, %v594, %v593
        %v596 = vsel %vm384, %v595, 0
        %598 = vmatprep.subr.mxu0 0.0
        %599 = vmatpush1.msra.mxu0 0.0
        %600 = vmatprep.subr.mxu0 0.0
        %601 = vmatpush1.msra.mxu0 0.0
        %602 = vmatprep.subr.mxu0 0.0
        %603 = vmatpush1.msra.mxu0 0.0
        %604 = vmatprep.subr.mxu0 0.0
        %605 = vmatpush1.msra.mxu0 0.0
        %606 = vmatprep.subr.mxu0 0.0
        %607 = vmatpush1.msra.mxu0 0.0
        %608 = vmatprep.subr.mxu0 0.0
        %609 = vmatpush1.msra.mxu0 0.0
        %610 = vmatprep.subr.mxu0 0.0
        %611 = vmatpush1.msra.mxu0 0.0
        %612 = vmatprep.subr.mxu0 0.0
        %613 = vmatpush1.msra.mxu0 0.0
        %614 = vmatprep.subr.mxu0 0.0
        %615 = vmatpush1.msra.mxu0 0.0
        %616 = vmatprep.subr.mxu0 0.0
        %617 = vmatpush1.msra.mxu0 0.0
        %618 = vmatprep.subr.mxu0 0.0
        %619 = vmatpush1.msra.mxu0 0.0
        %620 = vmatprep.subr.mxu0 0.0
        %621 = vmatpush1.msra.mxu0 0.0
        %622 = vmatprep.subr.mxu0 0.0
        %623 = vmatpush1.msra.mxu0 %v389
        %624 = vmatprep.subr.mxu0 0.0
        %625 = vmatpush1.msra.mxu0 %v338
        %626 = vmatprep.subr.mxu0 0.0
        %627 = vmatpush1.msra.mxu0 %v337
        %628 = vmatprep.subr.mxu0 0.0
        %629 = vmatpush1.msra.mxu0 %v336
        %630 = vmatprep.subr.mxu0 0.0
        %631 = vmatpush2.msra.mxu0 0.0
        %632 = vmatprep.subr.mxu0 0.0
        %633 = vmatpush2.msra.mxu0 0.0
        %634 = vmatprep.subr.mxu0 0.0
        %635 = vmatpush2.msra.mxu0 0.0
        %636 = vmatprep.subr.mxu0 0.0
        %637 = vmatpush2.msra.mxu0 0.0
        %638 = vmatprep.subr.mxu0 0.0
        %639 = vmatpush2.msra.mxu0 0.0
        %640 = vmatprep.subr.mxu0 0.0
        %641 = vmatpush2.msra.mxu0 0.0
        %642 = vmatprep.subr.mxu0 0.0
        %643 = vmatpush2.msra.mxu0 0.0
        %644 = vmatprep.subr.mxu0 0.0
        %645 = vmatpush2.msra.mxu0 0.0
        %646 = vmatprep.subr.mxu0 0.0
        %647 = vmatpush2.msra.mxu0 0.0
        %648 = vmatprep.subr.mxu0 0.0
        %649 = vmatpush2.msra.mxu0 0.0
        %650 = vmatprep.subr.mxu0 0.0
        %651 = vmatpush2.msra.mxu0 0.0
        %652 = vmatprep.subr.mxu0 0.0
        %653 = vmatpush2.msra.mxu0 0.0
        %654 = vmatprep.subr.mxu0 0.0
        %655 = vmatpush2.msra.mxu0 0.0
        %656 = vmatprep.subr.mxu0 0.0
        %657 = vmatpush2.msra.mxu0 0.0
        %658 = vmatprep.subr.mxu0 0.0
        %659 = vmatpush2.msra.mxu0 0.0
        %660 = vmatprep.subr.mxu0 0.0
        %661 = vmatpush2.msra.mxu0 0.0
        %662 = vmatprep.mubr.f32.mxu0 0.0
        %663 = vmatmul.mubr.f32.gmra.mxu0 %v596
        %v664 = vpop.f32.mrf.mxu0
        %v665 = vadd.f32 %v353, %v664
        %v666 = vpop.f32.mrf.mxu0
        %667 = vdwg.mxu0
        %s668 = scalar_lea.vmem [#allocation2], 16
        %669 = vst [vmem:[%s668] sm:$0xff] %v665
        %v670 = vld [vmem:[%s289 + $0x3] sm:$0x1]
        %v671 = vld [vmem:[%s289 + $0xb] sm:$0x1]
        %v672 = vld [vmem:[%s289 + $0x13] sm:$0x1]
        %v673 = vld [vmem:[%s289 + $0x1b] sm:$0x1]
        %v674 = vld [vmem:[%s289 + $0x23] sm:$0x1]
        %v675 = vld [vmem:[%s289 + $0x2b] sm:$0x1]
        %v676 = vld [vmem:[%s289 + $0x33] sm:$0x1]
        %v677 = vld [vmem:[%s289 + $0x3b] sm:$0x1]
        %v686 = vrot.slane %v671, 7
        %v687 = vsel %vm364, %v686, %v670
        %v688 = vrot.slane %v672, 6
        %v689 = vsel %vm367, %v688, %v687
        %v690 = vrot.slane %v673, 5
        %v691 = vsel %vm370, %v690, %v689
        %v692 = vrot.slane %v674, 4
        %v693 = vsel %vm373, %v692, %v691
        %v694 = vrot.slane %v675, 3
        %v695 = vsel %vm376, %v694, %v693
        %v696 = vrot.slane %v676, 2
        %v697 = vsel %vm379, %v696, %v695
        %v698 = vrot.slane %v677, 1
        %v699 = vsel %vm382, %v698, %v697
        %v700 = vsel %vm384, %v699, 0
        %702 = vmatprep.subr.mxu0 0.0
        %703 = vmatpush1.msra.mxu0 0.0
        %704 = vmatprep.subr.mxu0 0.0
        %705 = vmatpush1.msra.mxu0 0.0
        %706 = vmatprep.subr.mxu0 0.0
        %707 = vmatpush1.msra.mxu0 0.0
        %708 = vmatprep.subr.mxu0 0.0
        %709 = vmatpush1.msra.mxu0 0.0
        %710 = vmatprep.subr.mxu0 0.0
        %711 = vmatpush1.msra.mxu0 0.0
        %712 = vmatprep.subr.mxu0 0.0
        %713 = vmatpush1.msra.mxu0 0.0
        %714 = vmatprep.subr.mxu0 0.0
        %715 = vmatpush1.msra.mxu0 0.0
        %716 = vmatprep.subr.mxu0 0.0
        %717 = vmatpush1.msra.mxu0 0.0
        %718 = vmatprep.subr.mxu0 0.0
        %719 = vmatpush1.msra.mxu0 0.0
        %720 = vmatprep.subr.mxu0 0.0
        %721 = vmatpush1.msra.mxu0 0.0
        %722 = vmatprep.subr.mxu0 0.0
        %723 = vmatpush1.msra.mxu0 0.0
        %724 = vmatprep.subr.mxu0 0.0
        %725 = vmatpush1.msra.mxu0 0.0
        %726 = vmatprep.subr.mxu0 0.0
        %727 = vmatpush1.msra.mxu0 %v389
        %728 = vmatprep.subr.mxu0 0.0
        %729 = vmatpush1.msra.mxu0 %v338
        %730 = vmatprep.subr.mxu0 0.0
        %731 = vmatpush1.msra.mxu0 %v337
        %732 = vmatprep.subr.mxu0 0.0
        %733 = vmatpush1.msra.mxu0 %v336
        %734 = vmatprep.subr.mxu0 0.0
        %735 = vmatpush2.msra.mxu0 0.0
        %736 = vmatprep.subr.mxu0 0.0
        %737 = vmatpush2.msra.mxu0 0.0
        %738 = vmatprep.subr.mxu0 0.0
        %739 = vmatpush2.msra.mxu0 0.0
        %740 = vmatprep.subr.mxu0 0.0
        %741 = vmatpush2.msra.mxu0 0.0
        %742 = vmatprep.subr.mxu0 0.0
        %743 = vmatpush2.msra.mxu0 0.0
        %744 = vmatprep.subr.mxu0 0.0
        %745 = vmatpush2.msra.mxu0 0.0
        %746 = vmatprep.subr.mxu0 0.0
        %747 = vmatpush2.msra.mxu0 0.0
        %748 = vmatprep.subr.mxu0 0.0
        %749 = vmatpush2.msra.mxu0 0.0
        %750 = vmatprep.subr.mxu0 0.0
        %751 = vmatpush2.msra.mxu0 0.0
        %752 = vmatprep.subr.mxu0 0.0
        %753 = vmatpush2.msra.mxu0 0.0
        %754 = vmatprep.subr.mxu0 0.0
        %755 = vmatpush2.msra.mxu0 0.0
        %756 = vmatprep.subr.mxu0 0.0
        %757 = vmatpush2.msra.mxu0 0.0
        %758 = vmatprep.subr.mxu0 0.0
        %759 = vmatpush2.msra.mxu0 0.0
        %760 = vmatprep.subr.mxu0 0.0
        %761 = vmatpush2.msra.mxu0 0.0
        %762 = vmatprep.subr.mxu0 0.0
        %763 = vmatpush2.msra.mxu0 0.0
        %764 = vmatprep.subr.mxu0 0.0
        %765 = vmatpush2.msra.mxu0 0.0
        %766 = vmatprep.mubr.f32.mxu0 0.0
        %767 = vmatmul.mubr.f32.gmra.mxu0 %v700
        %v768 = vpop.f32.mrf.mxu0
        %v769 = vadd.f32 %v353, %v768
        %v770 = vpop.f32.mrf.mxu0
        %771 = vdwg.mxu0
        %s772 = scalar_lea.vmem [#allocation2], 24
        %773 = vst [vmem:[%s772] sm:$0xff] %v769
        %v774 = vld [vmem:[%s289 + $0x4] sm:$0x1]
        %v775 = vld [vmem:[%s289 + $0xc] sm:$0x1]
        %v776 = vld [vmem:[%s289 + $0x14] sm:$0x1]
        %v777 = vld [vmem:[%s289 + $0x1c] sm:$0x1]
        %v778 = vld [vmem:[%s289 + $0x24] sm:$0x1]
        %v779 = vld [vmem:[%s289 + $0x2c] sm:$0x1]
        %v780 = vld [vmem:[%s289 + $0x34] sm:$0x1]
        %v781 = vld [vmem:[%s289 + $0x3c] sm:$0x1]
        %v790 = vrot.slane %v775, 7
        %v791 = vsel %vm364, %v790, %v774
        %v792 = vrot.slane %v776, 6
        %v793 = vsel %vm367, %v792, %v791
        %v794 = vrot.slane %v777, 5
        %v795 = vsel %vm370, %v794, %v793
        %v796 = vrot.slane %v778, 4
        %v797 = vsel %vm373, %v796, %v795
        %v798 = vrot.slane %v779, 3
        %v799 = vsel %vm376, %v798, %v797
        %v800 = vrot.slane %v780, 2
        %v801 = vsel %vm379, %v800, %v799
        %v802 = vrot.slane %v781, 1
        %v803 = vsel %vm382, %v802, %v801
        %v804 = vsel %vm384, %v803, 0
        %806 = vmatprep.subr.mxu0 0.0
        %807 = vmatpush1.msra.mxu0 0.0
        %808 = vmatprep.subr.mxu0 0.0
        %809 = vmatpush1.msra.mxu0 0.0
        %810 = vmatprep.subr.mxu0 0.0
        %811 = vmatpush1.msra.mxu0 0.0
        %812 = vmatprep.subr.mxu0 0.0
        %813 = vmatpush1.msra.mxu0 0.0
        %814 = vmatprep.subr.mxu0 0.0
        %815 = vmatpush1.msra.mxu0 0.0
        %816 = vmatprep.subr.mxu0 0.0
        %817 = vmatpush1.msra.mxu0 0.0
        %818 = vmatprep.subr.mxu0 0.0
        %819 = vmatpush1.msra.mxu0 0.0
        %820 = vmatprep.subr.mxu0 0.0
        %821 = vmatpush1.msra.mxu0 0.0
        %822 = vmatprep.subr.mxu0 0.0
        %823 = vmatpush1.msra.mxu0 0.0
        %824 = vmatprep.subr.mxu0 0.0
        %825 = vmatpush1.msra.mxu0 0.0
        %826 = vmatprep.subr.mxu0 0.0
        %827 = vmatpush1.msra.mxu0 0.0
        %828 = vmatprep.subr.mxu0 0.0
        %829 = vmatpush1.msra.mxu0 0.0
        %830 = vmatprep.subr.mxu0 0.0
        %831 = vmatpush1.msra.mxu0 %v389
        %832 = vmatprep.subr.mxu0 0.0
        %833 = vmatpush1.msra.mxu0 %v338
        %834 = vmatprep.subr.mxu0 0.0
        %835 = vmatpush1.msra.mxu0 %v337
        %836 = vmatprep.subr.mxu0 0.0
        %837 = vmatpush1.msra.mxu0 %v336
        %838 = vmatprep.subr.mxu0 0.0
        %839 = vmatpush2.msra.mxu0 0.0
        %840 = vmatprep.subr.mxu0 0.0
        %841 = vmatpush2.msra.mxu0 0.0
        %842 = vmatprep.subr.mxu0 0.0
        %843 = vmatpush2.msra.mxu0 0.0
        %844 = vmatprep.subr.mxu0 0.0
        %845 = vmatpush2.msra.mxu0 0.0
        %846 = vmatprep.subr.mxu0 0.0
        %847 = vmatpush2.msra.mxu0 0.0
        %848 = vmatprep.subr.mxu0 0.0
        %849 = vmatpush2.msra.mxu0 0.0
        %850 = vmatprep.subr.mxu0 0.0
        %851 = vmatpush2.msra.mxu0 0.0
        %852 = vmatprep.subr.mxu0 0.0
        %853 = vmatpush2.msra.mxu0 0.0
        %854 = vmatprep.subr.mxu0 0.0
        %855 = vmatpush2.msra.mxu0 0.0
        %856 = vmatprep.subr.mxu0 0.0
        %857 = vmatpush2.msra.mxu0 0.0
        %858 = vmatprep.subr.mxu0 0.0
        %859 = vmatpush2.msra.mxu0 0.0
        %860 = vmatprep.subr.mxu0 0.0
        %861 = vmatpush2.msra.mxu0 0.0
        %862 = vmatprep.subr.mxu0 0.0
        %863 = vmatpush2.msra.mxu0 0.0
        %864 = vmatprep.subr.mxu0 0.0
        %865 = vmatpush2.msra.mxu0 0.0
        %866 = vmatprep.subr.mxu0 0.0
        %867 = vmatpush2.msra.mxu0 0.0
        %868 = vmatprep.subr.mxu0 0.0
        %869 = vmatpush2.msra.mxu0 0.0
        %870 = vmatprep.mubr.f32.mxu0 0.0
        %871 = vmatmul.mubr.f32.gmra.mxu0 %v804
        %v872 = vpop.f32.mrf.mxu0
        %v873 = vadd.f32 %v353, %v872
        %v874 = vpop.f32.mrf.mxu0
        %875 = vdwg.mxu0
        %s876 = scalar_lea.vmem [#allocation2], 32
        %877 = vst [vmem:[%s876] sm:$0xff] %v873
        %v878 = vld [vmem:[%s289 + $0x5] sm:$0x1]
        %v879 = vld [vmem:[%s289 + $0xd] sm:$0x1]
        %v880 = vld [vmem:[%s289 + $0x15] sm:$0x1]
        %v881 = vld [vmem:[%s289 + $0x1d] sm:$0x1]
        %v882 = vld [vmem:[%s289 + $0x25] sm:$0x1]
        %v883 = vld [vmem:[%s289 + $0x2d] sm:$0x1]
        %v884 = vld [vmem:[%s289 + $0x35] sm:$0x1]
        %v885 = vld [vmem:[%s289 + $0x3d] sm:$0x1]
        %v894 = vrot.slane %v879, 7
        %v895 = vsel %vm364, %v894, %v878
        %v896 = vrot.slane %v880, 6
        %v897 = vsel %vm367, %v896, %v895
        %v898 = vrot.slane %v881, 5
        %v899 = vsel %vm370, %v898, %v897
        %v900 = vrot.slane %v882, 4
        %v901 = vsel %vm373, %v900, %v899
        %v902 = vrot.slane %v883, 3
        %v903 = vsel %vm376, %v902, %v901
        %v904 = vrot.slane %v884, 2
        %v905 = vsel %vm379, %v904, %v903
        %v906 = vrot.slane %v885, 1
        %v907 = vsel %vm382, %v906, %v905
        %v908 = vsel %vm384, %v907, 0
        %910 = vmatprep.subr.mxu0 0.0
        %911 = vmatpush1.msra.mxu0 0.0
        %912 = vmatprep.subr.mxu0 0.0
        %913 = vmatpush1.msra.mxu0 0.0
        %914 = vmatprep.subr.mxu0 0.0
        %915 = vmatpush1.msra.mxu0 0.0
        %916 = vmatprep.subr.mxu0 0.0
        %917 = vmatpush1.msra.mxu0 0.0
        %918 = vmatprep.subr.mxu0 0.0
        %919 = vmatpush1.msra.mxu0 0.0
        %920 = vmatprep.subr.mxu0 0.0
        %921 = vmatpush1.msra.mxu0 0.0
        %922 = vmatprep.subr.mxu0 0.0
        %923 = vmatpush1.msra.mxu0 0.0
        %924 = vmatprep.subr.mxu0 0.0
        %925 = vmatpush1.msra.mxu0 0.0
        %926 = vmatprep.subr.mxu0 0.0
        %927 = vmatpush1.msra.mxu0 0.0
        %928 = vmatprep.subr.mxu0 0.0
        %929 = vmatpush1.msra.mxu0 0.0
        %930 = vmatprep.subr.mxu0 0.0
        %931 = vmatpush1.msra.mxu0 0.0
        %932 = vmatprep.subr.mxu0 0.0
        %933 = vmatpush1.msra.mxu0 0.0
        %934 = vmatprep.subr.mxu0 0.0
        %935 = vmatpush1.msra.mxu0 %v389
        %936 = vmatprep.subr.mxu0 0.0
        %937 = vmatpush1.msra.mxu0 %v338
        %938 = vmatprep.subr.mxu0 0.0
        %939 = vmatpush1.msra.mxu0 %v337
        %940 = vmatprep.subr.mxu0 0.0
        %941 = vmatpush1.msra.mxu0 %v336
        %942 = vmatprep.subr.mxu0 0.0
        %943 = vmatpush2.msra.mxu0 0.0
        %944 = vmatprep.subr.mxu0 0.0
        %945 = vmatpush2.msra.mxu0 0.0
        %946 = vmatprep.subr.mxu0 0.0
        %947 = vmatpush2.msra.mxu0 0.0
        %948 = vmatprep.subr.mxu0 0.0
        %949 = vmatpush2.msra.mxu0 0.0
        %950 = vmatprep.subr.mxu0 0.0
        %951 = vmatpush2.msra.mxu0 0.0
        %952 = vmatprep.subr.mxu0 0.0
        %953 = vmatpush2.msra.mxu0 0.0
        %954 = vmatprep.subr.mxu0 0.0
        %955 = vmatpush2.msra.mxu0 0.0
        %956 = vmatprep.subr.mxu0 0.0
        %957 = vmatpush2.msra.mxu0 0.0
        %958 = vmatprep.subr.mxu0 0.0
        %959 = vmatpush2.msra.mxu0 0.0
        %960 = vmatprep.subr.mxu0 0.0
        %961 = vmatpush2.msra.mxu0 0.0
        %962 = vmatprep.subr.mxu0 0.0
        %963 = vmatpush2.msra.mxu0 0.0
        %964 = vmatprep.subr.mxu0 0.0
        %965 = vmatpush2.msra.mxu0 0.0
        %966 = vmatprep.subr.mxu0 0.0
        %967 = vmatpush2.msra.mxu0 0.0
        %968 = vmatprep.subr.mxu0 0.0
        %969 = vmatpush2.msra.mxu0 0.0
        %970 = vmatprep.subr.mxu0 0.0
        %971 = vmatpush2.msra.mxu0 0.0
        %972 = vmatprep.subr.mxu0 0.0
        %973 = vmatpush2.msra.mxu0 0.0
        %974 = vmatprep.mubr.f32.mxu0 0.0
        %975 = vmatmul.mubr.f32.gmra.mxu0 %v908
        %v976 = vpop.f32.mrf.mxu0
        %v977 = vadd.f32 %v353, %v976
        %v978 = vpop.f32.mrf.mxu0
        %979 = vdwg.mxu0
        %s980 = scalar_lea.vmem [#allocation2], 40
        %981 = vst [vmem:[%s980] sm:$0xff] %v977
        %v982 = vld [vmem:[%s289 + $0x6] sm:$0x1]
        %v983 = vld [vmem:[%s289 + $0xe] sm:$0x1]
        %v984 = vld [vmem:[%s289 + $0x16] sm:$0x1]
        %v985 = vld [vmem:[%s289 + $0x1e] sm:$0x1]
        %v986 = vld [vmem:[%s289 + $0x26] sm:$0x1]
        %v987 = vld [vmem:[%s289 + $0x2e] sm:$0x1]
        %v988 = vld [vmem:[%s289 + $0x36] sm:$0x1]
        %v989 = vld [vmem:[%s289 + $0x3e] sm:$0x1]
        %v998 = vrot.slane %v983, 7
        %v999 = vsel %vm364, %v998, %v982
        %v1000 = vrot.slane %v984, 6
        %v1001 = vsel %vm367, %v1000, %v999
        %v1002 = vrot.slane %v985, 5
        %v1003 = vsel %vm370, %v1002, %v1001
        %v1004 = vrot.slane %v986, 4
        %v1005 = vsel %vm373, %v1004, %v1003
        %v1006 = vrot.slane %v987, 3
        %v1007 = vsel %vm376, %v1006, %v1005
        %v1008 = vrot.slane %v988, 2
        %v1009 = vsel %vm379, %v1008, %v1007
        %v1010 = vrot.slane %v989, 1
        %v1011 = vsel %vm382, %v1010, %v1009
        %v1012 = vsel %vm384, %v1011, 0
        %1014 = vmatprep.subr.mxu0 0.0
        %1015 = vmatpush1.msra.mxu0 0.0
        %1016 = vmatprep.subr.mxu0 0.0
        %1017 = vmatpush1.msra.mxu0 0.0
        %1018 = vmatprep.subr.mxu0 0.0
        %1019 = vmatpush1.msra.mxu0 0.0
        %1020 = vmatprep.subr.mxu0 0.0
        %1021 = vmatpush1.msra.mxu0 0.0
        %1022 = vmatprep.subr.mxu0 0.0
        %1023 = vmatpush1.msra.mxu0 0.0
        %1024 = vmatprep.subr.mxu0 0.0
        %1025 = vmatpush1.msra.mxu0 0.0
        %1026 = vmatprep.subr.mxu0 0.0
        %1027 = vmatpush1.msra.mxu0 0.0
        %1028 = vmatprep.subr.mxu0 0.0
        %1029 = vmatpush1.msra.mxu0 0.0
        %1030 = vmatprep.subr.mxu0 0.0
        %1031 = vmatpush1.msra.mxu0 0.0
        %1032 = vmatprep.subr.mxu0 0.0
        %1033 = vmatpush1.msra.mxu0 0.0
        %1034 = vmatprep.subr.mxu0 0.0
        %1035 = vmatpush1.msra.mxu0 0.0
        %1036 = vmatprep.subr.mxu0 0.0
        %1037 = vmatpush1.msra.mxu0 0.0
        %1038 = vmatprep.subr.mxu0 0.0
        %1039 = vmatpush1.msra.mxu0 %v389
        %1040 = vmatprep.subr.mxu0 0.0
        %1041 = vmatpush1.msra.mxu0 %v338
        %1042 = vmatprep.subr.mxu0 0.0
        %1043 = vmatpush1.msra.mxu0 %v337
        %1044 = vmatprep.subr.mxu0 0.0
        %1045 = vmatpush1.msra.mxu0 %v336
        %1046 = vmatprep.subr.mxu0 0.0
        %1047 = vmatpush2.msra.mxu0 0.0
        %1048 = vmatprep.subr.mxu0 0.0
        %1049 = vmatpush2.msra.mxu0 0.0
        %1050 = vmatprep.subr.mxu0 0.0
        %1051 = vmatpush2.msra.mxu0 0.0
        %1052 = vmatprep.subr.mxu0 0.0
        %1053 = vmatpush2.msra.mxu0 0.0
        %1054 = vmatprep.subr.mxu0 0.0
        %1055 = vmatpush2.msra.mxu0 0.0
        %1056 = vmatprep.subr.mxu0 0.0
        %1057 = vmatpush2.msra.mxu0 0.0
        %1058 = vmatprep.subr.mxu0 0.0
        %1059 = vmatpush2.msra.mxu0 0.0
        %1060 = vmatprep.subr.mxu0 0.0
        %1061 = vmatpush2.msra.mxu0 0.0
        %1062 = vmatprep.subr.mxu0 0.0
        %1063 = vmatpush2.msra.mxu0 0.0
        %1064 = vmatprep.subr.mxu0 0.0
        %1065 = vmatpush2.msra.mxu0 0.0
        %1066 = vmatprep.subr.mxu0 0.0
        %1067 = vmatpush2.msra.mxu0 0.0
        %1068 = vmatprep.subr.mxu0 0.0
        %1069 = vmatpush2.msra.mxu0 0.0
        %1070 = vmatprep.subr.mxu0 0.0
        %1071 = vmatpush2.msra.mxu0 0.0
        %1072 = vmatprep.subr.mxu0 0.0
        %1073 = vmatpush2.msra.mxu0 0.0
        %1074 = vmatprep.subr.mxu0 0.0
        %1075 = vmatpush2.msra.mxu0 0.0
        %1076 = vmatprep.subr.mxu0 0.0
        %1077 = vmatpush2.msra.mxu0 0.0
        %1078 = vmatprep.mubr.f32.mxu0 0.0
        %1079 = vmatmul.mubr.f32.gmra.mxu0 %v1012
        %v1080 = vpop.f32.mrf.mxu0
        %v1081 = vadd.f32 %v353, %v1080
        %v1082 = vpop.f32.mrf.mxu0
        %1083 = vdwg.mxu0
        %s1084 = scalar_lea.vmem [#allocation2], 48
        %1085 = vst [vmem:[%s1084] sm:$0xff] %v1081
        %v1086 = vld [vmem:[%s289 + $0x7] sm:$0x1]
        %v1087 = vld [vmem:[%s289 + $0xf] sm:$0x1]
        %v1088 = vld [vmem:[%s289 + $0x17] sm:$0x1]
        %v1089 = vld [vmem:[%s289 + $0x1f] sm:$0x1]
        %v1090 = vld [vmem:[%s289 + $0x27] sm:$0x1]
        %v1091 = vld [vmem:[%s289 + $0x2f] sm:$0x1]
        %v1092 = vld [vmem:[%s289 + $0x37] sm:$0x1]
        %v1093 = vld [vmem:[%s289 + $0x3f] sm:$0x1]
        %v1102 = vrot.slane %v1087, 7
        %v1103 = vsel %vm364, %v1102, %v1086
        %v1104 = vrot.slane %v1088, 6
        %v1105 = vsel %vm367, %v1104, %v1103
        %v1106 = vrot.slane %v1089, 5
        %v1107 = vsel %vm370, %v1106, %v1105
        %v1108 = vrot.slane %v1090, 4
        %v1109 = vsel %vm373, %v1108, %v1107
        %v1110 = vrot.slane %v1091, 3
        %v1111 = vsel %vm376, %v1110, %v1109
        %v1112 = vrot.slane %v1092, 2
        %v1113 = vsel %vm379, %v1112, %v1111
        %v1114 = vrot.slane %v1093, 1
        %v1115 = vsel %vm382, %v1114, %v1113
        %v1116 = vsel %vm384, %v1115, 0
        %1118 = vmatprep.subr.mxu0 0.0
        %1119 = vmatpush1.msra.mxu0 0.0
        %1120 = vmatprep.subr.mxu0 0.0
        %1121 = vmatpush1.msra.mxu0 0.0
        %1122 = vmatprep.subr.mxu0 0.0
        %1123 = vmatpush1.msra.mxu0 0.0
        %1124 = vmatprep.subr.mxu0 0.0
        %1125 = vmatpush1.msra.mxu0 0.0
        %1126 = vmatprep.subr.mxu0 0.0
        %1127 = vmatpush1.msra.mxu0 0.0
        %1128 = vmatprep.subr.mxu0 0.0
        %1129 = vmatpush1.msra.mxu0 0.0
        %1130 = vmatprep.subr.mxu0 0.0
        %1131 = vmatpush1.msra.mxu0 0.0
        %1132 = vmatprep.subr.mxu0 0.0
        %1133 = vmatpush1.msra.mxu0 0.0
        %1134 = vmatprep.subr.mxu0 0.0
        %1135 = vmatpush1.msra.mxu0 0.0
        %1136 = vmatprep.subr.mxu0 0.0
        %1137 = vmatpush1.msra.mxu0 0.0
        %1138 = vmatprep.subr.mxu0 0.0
        %1139 = vmatpush1.msra.mxu0 0.0
        %1140 = vmatprep.subr.mxu0 0.0
        %1141 = vmatpush1.msra.mxu0 0.0
        %1142 = vmatprep.subr.mxu0 0.0
        %1143 = vmatpush1.msra.mxu0 %v389
        %1144 = vmatprep.subr.mxu0 0.0
        %1145 = vmatpush1.msra.mxu0 %v338
        %1146 = vmatprep.subr.mxu0 0.0
        %1147 = vmatpush1.msra.mxu0 %v337
        %1148 = vmatprep.subr.mxu0 0.0
        %1149 = vmatpush1.msra.mxu0 %v336
        %1150 = vmatprep.subr.mxu0 0.0
        %1151 = vmatpush2.msra.mxu0 0.0
        %1152 = vmatprep.subr.mxu0 0.0
        %1153 = vmatpush2.msra.mxu0 0.0
        %1154 = vmatprep.subr.mxu0 0.0
        %1155 = vmatpush2.msra.mxu0 0.0
        %1156 = vmatprep.subr.mxu0 0.0
        %1157 = vmatpush2.msra.mxu0 0.0
        %1158 = vmatprep.subr.mxu0 0.0
        %1159 = vmatpush2.msra.mxu0 0.0
        %1160 = vmatprep.subr.mxu0 0.0
        %1161 = vmatpush2.msra.mxu0 0.0
        %1162 = vmatprep.subr.mxu0 0.0
        %1163 = vmatpush2.msra.mxu0 0.0
        %1164 = vmatprep.subr.mxu0 0.0
        %1165 = vmatpush2.msra.mxu0 0.0
        %1166 = vmatprep.subr.mxu0 0.0
        %1167 = vmatpush2.msra.mxu0 0.0
        %1168 = vmatprep.subr.mxu0 0.0
        %1169 = vmatpush2.msra.mxu0 0.0
        %1170 = vmatprep.subr.mxu0 0.0
        %1171 = vmatpush2.msra.mxu0 0.0
        %1172 = vmatprep.subr.mxu0 0.0
        %1173 = vmatpush2.msra.mxu0 0.0
        %1174 = vmatprep.subr.mxu0 0.0
        %1175 = vmatpush2.msra.mxu0 0.0
        %1176 = vmatprep.subr.mxu0 0.0
        %1177 = vmatpush2.msra.mxu0 0.0
        %1178 = vmatprep.subr.mxu0 0.0
        %1179 = vmatpush2.msra.mxu0 0.0
        %1180 = vmatprep.subr.mxu0 0.0
        %1181 = vmatpush2.msra.mxu0 0.0
        %1182 = vmatprep.mubr.f32.mxu0 0.0
        %1183 = vmatmul.mubr.f32.gmra.mxu0 %v1116
        %v1184 = vpop.f32.mrf.mxu0
        %v1185 = vadd.f32 %v353, %v1184
        %v1186 = vpop.f32.mrf.mxu0
        %1187 = vdwg.mxu0
        %s1188 = scalar_lea.vmem [#allocation2], 56
        %1189 = vst [vmem:[%s1188] sm:$0xff] %v1185
        %v1190 = vld [vmem:[#allocation9] sm:$0xff]
        %v1191 = vld [vmem:[#allocation9 + $0x8] sm:$0xff]
        %v1192 = vld [vmem:[#allocation9 + $0x10] sm:$0xff]
        %v1193 = vld [vmem:[#allocation9 + $0x18] sm:$0xff]
        %v1194 = vld [vmem:[#allocation9 + $0x20] sm:$0xff]
        %v1195 = vld [vmem:[#allocation9 + $0x28] sm:$0xff]
        %v1196 = vld [vmem:[#allocation9 + $0x30] sm:$0xff]
        %v1197 = vld [vmem:[#allocation9 + $0x38] sm:$0xff]
        %v1198 = vld [vmem:[#allocation9 + $0x40] sm:$0xff]
        %v1199 = vld [vmem:[#allocation9 + $0x48] sm:$0xff]
        %v1200 = vld [vmem:[#allocation9 + $0x50] sm:$0xff]
        %v1201 = vld [vmem:[#allocation9 + $0x58] sm:$0xff]
        %v1202 = vld [vmem:[#allocation9 + $0x60] sm:$0xff]
        %v1203 = vld [vmem:[#allocation9 + $0x68] sm:$0xff]
        %v1204 = vld [vmem:[#allocation9 + $0x70] sm:$0xff]
        %v1205 = vld [vmem:[#allocation9 + $0x78] sm:$0xff]
        %v1206 = vld [vmem:[#allocation3] sm:$0xff]
        %v1207 = vld [vmem:[#allocation2] sm:$0xff]
        %1208 = vmatprep.subr.mxu0 0.0
        %1209 = vmatpush1.msra.mxu0 %v1205
        %1210 = vmatprep.subr.mxu0 0.0
        %1211 = vmatpush1.msra.mxu0 %v1204
        %1212 = vmatprep.subr.mxu0 0.0
        %1213 = vmatpush1.msra.mxu0 %v1203
        %1214 = vmatprep.subr.mxu0 0.0
        %1215 = vmatpush1.msra.mxu0 %v1202
        %1216 = vmatprep.subr.mxu0 0.0
        %1217 = vmatpush1.msra.mxu0 %v1201
        %1218 = vmatprep.subr.mxu0 0.0
        %1219 = vmatpush1.msra.mxu0 %v1200
        %1220 = vmatprep.subr.mxu0 0.0
        %1221 = vmatpush1.msra.mxu0 %v1199
        %1222 = vmatprep.subr.mxu0 0.0
        %1223 = vmatpush1.msra.mxu0 %v1198
        %1224 = vmatprep.subr.mxu0 0.0
        %1225 = vmatpush1.msra.mxu0 %v1197
        %1226 = vmatprep.subr.mxu0 0.0
        %1227 = vmatpush1.msra.mxu0 %v1196
        %1228 = vmatprep.subr.mxu0 0.0
        %1229 = vmatpush1.msra.mxu0 %v1195
        %1230 = vmatprep.subr.mxu0 0.0
        %1231 = vmatpush1.msra.mxu0 %v1194
        %1232 = vmatprep.subr.mxu0 0.0
        %1233 = vmatpush1.msra.mxu0 %v1193
        %1234 = vmatprep.subr.mxu0 0.0
        %1235 = vmatpush1.msra.mxu0 %v1192
        %1236 = vmatprep.subr.mxu0 0.0
        %1237 = vmatpush1.msra.mxu0 %v1191
        %1238 = vmatprep.subr.mxu0 0.0
        %1239 = vmatpush1.msra.mxu0 %v1190
        %1240 = vmatprep.subr.mxu0 0.0
        %1241 = vmatpush2.msra.mxu0 0.0
        %1242 = vmatprep.subr.mxu0 0.0
        %1243 = vmatpush2.msra.mxu0 0.0
        %1244 = vmatprep.subr.mxu0 0.0
        %1245 = vmatpush2.msra.mxu0 0.0
        %1246 = vmatprep.subr.mxu0 0.0
        %1247 = vmatpush2.msra.mxu0 0.0
        %1248 = vmatprep.subr.mxu0 0.0
        %1249 = vmatpush2.msra.mxu0 0.0
        %1250 = vmatprep.subr.mxu0 0.0
        %1251 = vmatpush2.msra.mxu0 0.0
        %1252 = vmatprep.subr.mxu0 0.0
        %1253 = vmatpush2.msra.mxu0 0.0
        %1254 = vmatprep.subr.mxu0 0.0
        %1255 = vmatpush2.msra.mxu0 0.0
        %1256 = vmatprep.subr.mxu0 0.0
        %1257 = vmatpush2.msra.mxu0 0.0
        %1258 = vmatprep.subr.mxu0 0.0
        %1259 = vmatpush2.msra.mxu0 0.0
        %1260 = vmatprep.subr.mxu0 0.0
        %1261 = vmatpush2.msra.mxu0 0.0
        %1262 = vmatprep.subr.mxu0 0.0
        %1263 = vmatpush2.msra.mxu0 0.0
        %1264 = vmatprep.subr.mxu0 0.0
        %1265 = vmatpush2.msra.mxu0 0.0
        %1266 = vmatprep.subr.mxu0 0.0
        %1267 = vmatpush2.msra.mxu0 0.0
        %1268 = vmatprep.subr.mxu0 0.0
        %1269 = vmatpush2.msra.mxu0 0.0
        %1270 = vmatprep.subr.mxu0 0.0
        %1271 = vmatpush2.msra.mxu0 0.0
        %1272 = vmatprep.mubr.f32.mxu0 0.0
        %1273 = vmatmul.mubr.f32.gmra.mxu0 %v1206
        %v1274 = vpop.f32.mrf.mxu0
        %v1275 = vadd.f32 %v1207, %v1274
        %v1276 = vpop.f32.mrf.mxu0
        %1277 = vdwg.mxu0
        %v1278 = vtanh.pop %v1275
        %v1279 = vld [vmem:[%s564] sm:$0xff]
        %1280 = vmatprep.subr.mxu0 0.0
        %1281 = vmatpush1.msra.mxu0 %v1205
        %1282 = vmatprep.subr.mxu0 0.0
        %1283 = vmatpush1.msra.mxu0 %v1204
        %1284 = vmatprep.subr.mxu0 0.0
        %1285 = vmatpush1.msra.mxu0 %v1203
        %1286 = vmatprep.subr.mxu0 0.0
        %1287 = vmatpush1.msra.mxu0 %v1202
        %1288 = vmatprep.subr.mxu0 0.0
        %1289 = vmatpush1.msra.mxu0 %v1201
        %1290 = vmatprep.subr.mxu0 0.0
        %1291 = vmatpush1.msra.mxu0 %v1200
        %1292 = vmatprep.subr.mxu0 0.0
        %1293 = vmatpush1.msra.mxu0 %v1199
        %1294 = vmatprep.subr.mxu0 0.0
        %1295 = vmatpush1.msra.mxu0 %v1198
        %1296 = vmatprep.subr.mxu0 0.0
        %1297 = vmatpush1.msra.mxu0 %v1197
        %1298 = vmatprep.subr.mxu0 0.0
        %1299 = vmatpush1.msra.mxu0 %v1196
        %1300 = vmatprep.subr.mxu0 0.0
        %1301 = vmatpush1.msra.mxu0 %v1195
        %1302 = vmatprep.subr.mxu0 0.0
        %1303 = vmatpush1.msra.mxu0 %v1194
        %1304 = vmatprep.subr.mxu0 0.0
        %1305 = vmatpush1.msra.mxu0 %v1193
        %1306 = vmatprep.subr.mxu0 0.0
        %1307 = vmatpush1.msra.mxu0 %v1192
        %1308 = vmatprep.subr.mxu0 0.0
        %1309 = vmatpush1.msra.mxu0 %v1191
        %1310 = vmatprep.subr.mxu0 0.0
        %1311 = vmatpush1.msra.mxu0 %v1190
        %1312 = vmatprep.subr.mxu0 0.0
        %1313 = vmatpush2.msra.mxu0 0.0
        %1314 = vmatprep.subr.mxu0 0.0
        %1315 = vmatpush2.msra.mxu0 0.0
        %1316 = vmatprep.subr.mxu0 0.0
        %1317 = vmatpush2.msra.mxu0 0.0
        %1318 = vmatprep.subr.mxu0 0.0
        %1319 = vmatpush2.msra.mxu0 0.0
        %1320 = vmatprep.subr.mxu0 0.0
        %1321 = vmatpush2.msra.mxu0 0.0
        %1322 = vmatprep.subr.mxu0 0.0
        %1323 = vmatpush2.msra.mxu0 0.0
        %1324 = vmatprep.subr.mxu0 0.0
        %1325 = vmatpush2.msra.mxu0 0.0
        %1326 = vmatprep.subr.mxu0 0.0
        %1327 = vmatpush2.msra.mxu0 0.0
        %1328 = vmatprep.subr.mxu0 0.0
        %1329 = vmatpush2.msra.mxu0 0.0
        %1330 = vmatprep.subr.mxu0 0.0
        %1331 = vmatpush2.msra.mxu0 0.0
        %1332 = vmatprep.subr.mxu0 0.0
        %1333 = vmatpush2.msra.mxu0 0.0
        %1334 = vmatprep.subr.mxu0 0.0
        %1335 = vmatpush2.msra.mxu0 0.0
        %1336 = vmatprep.subr.mxu0 0.0
        %1337 = vmatpush2.msra.mxu0 0.0
        %1338 = vmatprep.subr.mxu0 0.0
        %1339 = vmatpush2.msra.mxu0 0.0
        %1340 = vmatprep.subr.mxu0 0.0
        %1341 = vmatpush2.msra.mxu0 0.0
        %1342 = vmatprep.subr.mxu0 0.0
        %1343 = vmatpush2.msra.mxu0 0.0
        %1344 = vmatprep.mubr.f32.mxu0 0.0
        %1345 = vmatmul.mubr.f32.gmra.mxu0 %v1278
        %v1346 = vpop.f32.mrf.mxu0
        %v1347 = vadd.f32 %v1279, %v1346
        %v1348 = vpop.f32.mrf.mxu0
        %1349 = vdwg.mxu0
        %v1350 = vtanh.pop %v1347
        %v1351 = vld [vmem:[%s668] sm:$0xff]
        %1352 = vmatprep.subr.mxu0 0.0
        %1353 = vmatpush1.msra.mxu0 %v1205
        %1354 = vmatprep.subr.mxu0 0.0
        %1355 = vmatpush1.msra.mxu0 %v1204
        %1356 = vmatprep.subr.mxu0 0.0
        %1357 = vmatpush1.msra.mxu0 %v1203
        %1358 = vmatprep.subr.mxu0 0.0
        %1359 = vmatpush1.msra.mxu0 %v1202
        %1360 = vmatprep.subr.mxu0 0.0
        %1361 = vmatpush1.msra.mxu0 %v1201
        %1362 = vmatprep.subr.mxu0 0.0
        %1363 = vmatpush1.msra.mxu0 %v1200
        %1364 = vmatprep.subr.mxu0 0.0
        %1365 = vmatpush1.msra.mxu0 %v1199
        %1366 = vmatprep.subr.mxu0 0.0
        %1367 = vmatpush1.msra.mxu0 %v1198
        %1368 = vmatprep.subr.mxu0 0.0
        %1369 = vmatpush1.msra.mxu0 %v1197
        %1370 = vmatprep.subr.mxu0 0.0
        %1371 = vmatpush1.msra.mxu0 %v1196
        %1372 = vmatprep.subr.mxu0 0.0
        %1373 = vmatpush1.msra.mxu0 %v1195
        %1374 = vmatprep.subr.mxu0 0.0
        %1375 = vmatpush1.msra.mxu0 %v1194
        %1376 = vmatprep.subr.mxu0 0.0
        %1377 = vmatpush1.msra.mxu0 %v1193
        %1378 = vmatprep.subr.mxu0 0.0
        %1379 = vmatpush1.msra.mxu0 %v1192
        %1380 = vmatprep.subr.mxu0 0.0
        %1381 = vmatpush1.msra.mxu0 %v1191
        %1382 = vmatprep.subr.mxu0 0.0
        %1383 = vmatpush1.msra.mxu0 %v1190
        %1384 = vmatprep.subr.mxu0 0.0
        %1385 = vmatpush2.msra.mxu0 0.0
        %1386 = vmatprep.subr.mxu0 0.0
        %1387 = vmatpush2.msra.mxu0 0.0
        %1388 = vmatprep.subr.mxu0 0.0
        %1389 = vmatpush2.msra.mxu0 0.0
        %1390 = vmatprep.subr.mxu0 0.0
        %1391 = vmatpush2.msra.mxu0 0.0
        %1392 = vmatprep.subr.mxu0 0.0
        %1393 = vmatpush2.msra.mxu0 0.0
        %1394 = vmatprep.subr.mxu0 0.0
        %1395 = vmatpush2.msra.mxu0 0.0
        %1396 = vmatprep.subr.mxu0 0.0
        %1397 = vmatpush2.msra.mxu0 0.0
        %1398 = vmatprep.subr.mxu0 0.0
        %1399 = vmatpush2.msra.mxu0 0.0
        %1400 = vmatprep.subr.mxu0 0.0
        %1401 = vmatpush2.msra.mxu0 0.0
        %1402 = vmatprep.subr.mxu0 0.0
        %1403 = vmatpush2.msra.mxu0 0.0
        %1404 = vmatprep.subr.mxu0 0.0
        %1405 = vmatpush2.msra.mxu0 0.0
        %1406 = vmatprep.subr.mxu0 0.0
        %1407 = vmatpush2.msra.mxu0 0.0
        %1408 = vmatprep.subr.mxu0 0.0
        %1409 = vmatpush2.msra.mxu0 0.0
        %1410 = vmatprep.subr.mxu0 0.0
        %1411 = vmatpush2.msra.mxu0 0.0
        %1412 = vmatprep.subr.mxu0 0.0
        %1413 = vmatpush2.msra.mxu0 0.0
        %1414 = vmatprep.subr.mxu0 0.0
        %1415 = vmatpush2.msra.mxu0 0.0
        %1416 = vmatprep.mubr.f32.mxu0 0.0
        %1417 = vmatmul.mubr.f32.gmra.mxu0 %v1350
        %v1418 = vpop.f32.mrf.mxu0
        %v1419 = vadd.f32 %v1351, %v1418
        %v1420 = vpop.f32.mrf.mxu0
        %1421 = vdwg.mxu0
        %v1422 = vtanh.pop %v1419
        %v1423 = vld [vmem:[%s772] sm:$0xff]
        %1424 = vmatprep.subr.mxu0 0.0
        %1425 = vmatpush1.msra.mxu0 %v1205
        %1426 = vmatprep.subr.mxu0 0.0
        %1427 = vmatpush1.msra.mxu0 %v1204
        %1428 = vmatprep.subr.mxu0 0.0
        %1429 = vmatpush1.msra.mxu0 %v1203
        %1430 = vmatprep.subr.mxu0 0.0
        %1431 = vmatpush1.msra.mxu0 %v1202
        %1432 = vmatprep.subr.mxu0 0.0
        %1433 = vmatpush1.msra.mxu0 %v1201
        %1434 = vmatprep.subr.mxu0 0.0
        %1435 = vmatpush1.msra.mxu0 %v1200
        %1436 = vmatprep.subr.mxu0 0.0
        %1437 = vmatpush1.msra.mxu0 %v1199
        %1438 = vmatprep.subr.mxu0 0.0
        %1439 = vmatpush1.msra.mxu0 %v1198
        %1440 = vmatprep.subr.mxu0 0.0
        %1441 = vmatpush1.msra.mxu0 %v1197
        %1442 = vmatprep.subr.mxu0 0.0
        %1443 = vmatpush1.msra.mxu0 %v1196
        %1444 = vmatprep.subr.mxu0 0.0
        %1445 = vmatpush1.msra.mxu0 %v1195
        %1446 = vmatprep.subr.mxu0 0.0
        %1447 = vmatpush1.msra.mxu0 %v1194
        %1448 = vmatprep.subr.mxu0 0.0
        %1449 = vmatpush1.msra.mxu0 %v1193
        %1450 = vmatprep.subr.mxu0 0.0
        %1451 = vmatpush1.msra.mxu0 %v1192
        %1452 = vmatprep.subr.mxu0 0.0
        %1453 = vmatpush1.msra.mxu0 %v1191
        %1454 = vmatprep.subr.mxu0 0.0
        %1455 = vmatpush1.msra.mxu0 %v1190
        %1456 = vmatprep.subr.mxu0 0.0
        %1457 = vmatpush2.msra.mxu0 0.0
        %1458 = vmatprep.subr.mxu0 0.0
        %1459 = vmatpush2.msra.mxu0 0.0
        %1460 = vmatprep.subr.mxu0 0.0
        %1461 = vmatpush2.msra.mxu0 0.0
        %1462 = vmatprep.subr.mxu0 0.0
        %1463 = vmatpush2.msra.mxu0 0.0
        %1464 = vmatprep.subr.mxu0 0.0
        %1465 = vmatpush2.msra.mxu0 0.0
        %1466 = vmatprep.subr.mxu0 0.0
        %1467 = vmatpush2.msra.mxu0 0.0
        %1468 = vmatprep.subr.mxu0 0.0
        %1469 = vmatpush2.msra.mxu0 0.0
        %1470 = vmatprep.subr.mxu0 0.0
        %1471 = vmatpush2.msra.mxu0 0.0
        %1472 = vmatprep.subr.mxu0 0.0
        %1473 = vmatpush2.msra.mxu0 0.0
        %1474 = vmatprep.subr.mxu0 0.0
        %1475 = vmatpush2.msra.mxu0 0.0
        %1476 = vmatprep.subr.mxu0 0.0
        %1477 = vmatpush2.msra.mxu0 0.0
        %1478 = vmatprep.subr.mxu0 0.0
        %1479 = vmatpush2.msra.mxu0 0.0
        %1480 = vmatprep.subr.mxu0 0.0
        %1481 = vmatpush2.msra.mxu0 0.0
        %1482 = vmatprep.subr.mxu0 0.0
        %1483 = vmatpush2.msra.mxu0 0.0
        %1484 = vmatprep.subr.mxu0 0.0
        %1485 = vmatpush2.msra.mxu0 0.0
        %1486 = vmatprep.subr.mxu0 0.0
        %1487 = vmatpush2.msra.mxu0 0.0
        %1488 = vmatprep.mubr.f32.mxu0 0.0
        %1489 = vmatmul.mubr.f32.gmra.mxu0 %v1422
        %v1490 = vpop.f32.mrf.mxu0
        %v1491 = vadd.f32 %v1423, %v1490
        %v1492 = vpop.f32.mrf.mxu0
        %1493 = vdwg.mxu0
        %v1494 = vtanh.pop %v1491
        %v1495 = vld [vmem:[%s876] sm:$0xff]
        %1496 = vmatprep.subr.mxu0 0.0
        %1497 = vmatpush1.msra.mxu0 %v1205
        %1498 = vmatprep.subr.mxu0 0.0
        %1499 = vmatpush1.msra.mxu0 %v1204
        %1500 = vmatprep.subr.mxu0 0.0
        %1501 = vmatpush1.msra.mxu0 %v1203
        %1502 = vmatprep.subr.mxu0 0.0
        %1503 = vmatpush1.msra.mxu0 %v1202
        %1504 = vmatprep.subr.mxu0 0.0
        %1505 = vmatpush1.msra.mxu0 %v1201
        %1506 = vmatprep.subr.mxu0 0.0
        %1507 = vmatpush1.msra.mxu0 %v1200
        %1508 = vmatprep.subr.mxu0 0.0
        %1509 = vmatpush1.msra.mxu0 %v1199
        %1510 = vmatprep.subr.mxu0 0.0
        %1511 = vmatpush1.msra.mxu0 %v1198
        %1512 = vmatprep.subr.mxu0 0.0
        %1513 = vmatpush1.msra.mxu0 %v1197
        %1514 = vmatprep.subr.mxu0 0.0
        %1515 = vmatpush1.msra.mxu0 %v1196
        %1516 = vmatprep.subr.mxu0 0.0
        %1517 = vmatpush1.msra.mxu0 %v1195
        %1518 = vmatprep.subr.mxu0 0.0
        %1519 = vmatpush1.msra.mxu0 %v1194
        %1520 = vmatprep.subr.mxu0 0.0
        %1521 = vmatpush1.msra.mxu0 %v1193
        %1522 = vmatprep.subr.mxu0 0.0
        %1523 = vmatpush1.msra.mxu0 %v1192
        %1524 = vmatprep.subr.mxu0 0.0
        %1525 = vmatpush1.msra.mxu0 %v1191
        %1526 = vmatprep.subr.mxu0 0.0
        %1527 = vmatpush1.msra.mxu0 %v1190
        %1528 = vmatprep.subr.mxu0 0.0
        %1529 = vmatpush2.msra.mxu0 0.0
        %1530 = vmatprep.subr.mxu0 0.0
        %1531 = vmatpush2.msra.mxu0 0.0
        %1532 = vmatprep.subr.mxu0 0.0
        %1533 = vmatpush2.msra.mxu0 0.0
        %1534 = vmatprep.subr.mxu0 0.0
        %1535 = vmatpush2.msra.mxu0 0.0
        %1536 = vmatprep.subr.mxu0 0.0
        %1537 = vmatpush2.msra.mxu0 0.0
        %1538 = vmatprep.subr.mxu0 0.0
        %1539 = vmatpush2.msra.mxu0 0.0
        %1540 = vmatprep.subr.mxu0 0.0
        %1541 = vmatpush2.msra.mxu0 0.0
        %1542 = vmatprep.subr.mxu0 0.0
        %1543 = vmatpush2.msra.mxu0 0.0
        %1544 = vmatprep.subr.mxu0 0.0
        %1545 = vmatpush2.msra.mxu0 0.0
        %1546 = vmatprep.subr.mxu0 0.0
        %1547 = vmatpush2.msra.mxu0 0.0
        %1548 = vmatprep.subr.mxu0 0.0
        %1549 = vmatpush2.msra.mxu0 0.0
        %1550 = vmatprep.subr.mxu0 0.0
        %1551 = vmatpush2.msra.mxu0 0.0
        %1552 = vmatprep.subr.mxu0 0.0
        %1553 = vmatpush2.msra.mxu0 0.0
        %1554 = vmatprep.subr.mxu0 0.0
        %1555 = vmatpush2.msra.mxu0 0.0
        %1556 = vmatprep.subr.mxu0 0.0
        %1557 = vmatpush2.msra.mxu0 0.0
        %1558 = vmatprep.subr.mxu0 0.0
        %1559 = vmatpush2.msra.mxu0 0.0
        %1560 = vmatprep.mubr.f32.mxu0 0.0
        %1561 = vmatmul.mubr.f32.gmra.mxu0 %v1494
        %v1562 = vpop.f32.mrf.mxu0
        %v1563 = vadd.f32 %v1495, %v1562
        %v1564 = vpop.f32.mrf.mxu0
        %1565 = vdwg.mxu0
        %v1566 = vtanh.pop %v1563
        %v1567 = vld [vmem:[%s980] sm:$0xff]
        %1568 = vmatprep.subr.mxu0 0.0
        %1569 = vmatpush1.msra.mxu0 %v1205
        %1570 = vmatprep.subr.mxu0 0.0
        %1571 = vmatpush1.msra.mxu0 %v1204
        %1572 = vmatprep.subr.mxu0 0.0
        %1573 = vmatpush1.msra.mxu0 %v1203
        %1574 = vmatprep.subr.mxu0 0.0
        %1575 = vmatpush1.msra.mxu0 %v1202
        %1576 = vmatprep.subr.mxu0 0.0
        %1577 = vmatpush1.msra.mxu0 %v1201
        %1578 = vmatprep.subr.mxu0 0.0
        %1579 = vmatpush1.msra.mxu0 %v1200
        %1580 = vmatprep.subr.mxu0 0.0
        %1581 = vmatpush1.msra.mxu0 %v1199
        %1582 = vmatprep.subr.mxu0 0.0
        %1583 = vmatpush1.msra.mxu0 %v1198
        %1584 = vmatprep.subr.mxu0 0.0
        %1585 = vmatpush1.msra.mxu0 %v1197
        %1586 = vmatprep.subr.mxu0 0.0
        %1587 = vmatpush1.msra.mxu0 %v1196
        %1588 = vmatprep.subr.mxu0 0.0
        %1589 = vmatpush1.msra.mxu0 %v1195
        %1590 = vmatprep.subr.mxu0 0.0
        %1591 = vmatpush1.msra.mxu0 %v1194
        %1592 = vmatprep.subr.mxu0 0.0
        %1593 = vmatpush1.msra.mxu0 %v1193
        %1594 = vmatprep.subr.mxu0 0.0
        %1595 = vmatpush1.msra.mxu0 %v1192
        %1596 = vmatprep.subr.mxu0 0.0
        %1597 = vmatpush1.msra.mxu0 %v1191
        %1598 = vmatprep.subr.mxu0 0.0
        %1599 = vmatpush1.msra.mxu0 %v1190
        %1600 = vmatprep.subr.mxu0 0.0
        %1601 = vmatpush2.msra.mxu0 0.0
        %1602 = vmatprep.subr.mxu0 0.0
        %1603 = vmatpush2.msra.mxu0 0.0
        %1604 = vmatprep.subr.mxu0 0.0
        %1605 = vmatpush2.msra.mxu0 0.0
        %1606 = vmatprep.subr.mxu0 0.0
        %1607 = vmatpush2.msra.mxu0 0.0
        %1608 = vmatprep.subr.mxu0 0.0
        %1609 = vmatpush2.msra.mxu0 0.0
        %1610 = vmatprep.subr.mxu0 0.0
        %1611 = vmatpush2.msra.mxu0 0.0
        %1612 = vmatprep.subr.mxu0 0.0
        %1613 = vmatpush2.msra.mxu0 0.0
        %1614 = vmatprep.subr.mxu0 0.0
        %1615 = vmatpush2.msra.mxu0 0.0
        %1616 = vmatprep.subr.mxu0 0.0
        %1617 = vmatpush2.msra.mxu0 0.0
        %1618 = vmatprep.subr.mxu0 0.0
        %1619 = vmatpush2.msra.mxu0 0.0
        %1620 = vmatprep.subr.mxu0 0.0
        %1621 = vmatpush2.msra.mxu0 0.0
        %1622 = vmatprep.subr.mxu0 0.0
        %1623 = vmatpush2.msra.mxu0 0.0
        %1624 = vmatprep.subr.mxu0 0.0
        %1625 = vmatpush2.msra.mxu0 0.0
        %1626 = vmatprep.subr.mxu0 0.0
        %1627 = vmatpush2.msra.mxu0 0.0
        %1628 = vmatprep.subr.mxu0 0.0
        %1629 = vmatpush2.msra.mxu0 0.0
        %1630 = vmatprep.subr.mxu0 0.0
        %1631 = vmatpush2.msra.mxu0 0.0
        %1632 = vmatprep.mubr.f32.mxu0 0.0
        %1633 = vmatmul.mubr.f32.gmra.mxu0 %v1566
        %v1634 = vpop.f32.mrf.mxu0
        %v1635 = vadd.f32 %v1567, %v1634
        %v1636 = vpop.f32.mrf.mxu0
        %1637 = vdwg.mxu0
        %v1638 = vtanh.pop %v1635
        %v1639 = vld [vmem:[%s1084] sm:$0xff]
        %1640 = vmatprep.subr.mxu0 0.0
        %1641 = vmatpush1.msra.mxu0 %v1205
        %1642 = vmatprep.subr.mxu0 0.0
        %1643 = vmatpush1.msra.mxu0 %v1204
        %1644 = vmatprep.subr.mxu0 0.0
        %1645 = vmatpush1.msra.mxu0 %v1203
        %1646 = vmatprep.subr.mxu0 0.0
        %1647 = vmatpush1.msra.mxu0 %v1202
        %1648 = vmatprep.subr.mxu0 0.0
        %1649 = vmatpush1.msra.mxu0 %v1201
        %1650 = vmatprep.subr.mxu0 0.0
        %1651 = vmatpush1.msra.mxu0 %v1200
        %1652 = vmatprep.subr.mxu0 0.0
        %1653 = vmatpush1.msra.mxu0 %v1199
        %1654 = vmatprep.subr.mxu0 0.0
        %1655 = vmatpush1.msra.mxu0 %v1198
        %1656 = vmatprep.subr.mxu0 0.0
        %1657 = vmatpush1.msra.mxu0 %v1197
        %1658 = vmatprep.subr.mxu0 0.0
        %1659 = vmatpush1.msra.mxu0 %v1196
        %1660 = vmatprep.subr.mxu0 0.0
        %1661 = vmatpush1.msra.mxu0 %v1195
        %1662 = vmatprep.subr.mxu0 0.0
        %1663 = vmatpush1.msra.mxu0 %v1194
        %1664 = vmatprep.subr.mxu0 0.0
        %1665 = vmatpush1.msra.mxu0 %v1193
        %1666 = vmatprep.subr.mxu0 0.0
        %1667 = vmatpush1.msra.mxu0 %v1192
        %1668 = vmatprep.subr.mxu0 0.0
        %1669 = vmatpush1.msra.mxu0 %v1191
        %1670 = vmatprep.subr.mxu0 0.0
        %1671 = vmatpush1.msra.mxu0 %v1190
        %1672 = vmatprep.subr.mxu0 0.0
        %1673 = vmatpush2.msra.mxu0 0.0
        %1674 = vmatprep.subr.mxu0 0.0
        %1675 = vmatpush2.msra.mxu0 0.0
        %1676 = vmatprep.subr.mxu0 0.0
        %1677 = vmatpush2.msra.mxu0 0.0
        %1678 = vmatprep.subr.mxu0 0.0
        %1679 = vmatpush2.msra.mxu0 0.0
        %1680 = vmatprep.subr.mxu0 0.0
        %1681 = vmatpush2.msra.mxu0 0.0
        %1682 = vmatprep.subr.mxu0 0.0
        %1683 = vmatpush2.msra.mxu0 0.0
        %1684 = vmatprep.subr.mxu0 0.0
        %1685 = vmatpush2.msra.mxu0 0.0
        %1686 = vmatprep.subr.mxu0 0.0
        %1687 = vmatpush2.msra.mxu0 0.0
        %1688 = vmatprep.subr.mxu0 0.0
        %1689 = vmatpush2.msra.mxu0 0.0
        %1690 = vmatprep.subr.mxu0 0.0
        %1691 = vmatpush2.msra.mxu0 0.0
        %1692 = vmatprep.subr.mxu0 0.0
        %1693 = vmatpush2.msra.mxu0 0.0
        %1694 = vmatprep.subr.mxu0 0.0
        %1695 = vmatpush2.msra.mxu0 0.0
        %1696 = vmatprep.subr.mxu0 0.0
        %1697 = vmatpush2.msra.mxu0 0.0
        %1698 = vmatprep.subr.mxu0 0.0
        %1699 = vmatpush2.msra.mxu0 0.0
        %1700 = vmatprep.subr.mxu0 0.0
        %1701 = vmatpush2.msra.mxu0 0.0
        %1702 = vmatprep.subr.mxu0 0.0
        %1703 = vmatpush2.msra.mxu0 0.0
        %1704 = vmatprep.mubr.f32.mxu0 0.0
        %1705 = vmatmul.mubr.f32.gmra.mxu0 %v1638
        %v1706 = vpop.f32.mrf.mxu0
        %v1707 = vadd.f32 %v1639, %v1706
        %v1708 = vpop.f32.mrf.mxu0
        %1709 = vdwg.mxu0
        %v1710 = vtanh.pop %v1707
        %v1711 = vld [vmem:[%s1188] sm:$0xff]
        %1712 = vmatprep.subr.mxu0 0.0
        %1713 = vmatpush1.msra.mxu0 %v1205
        %1714 = vmatprep.subr.mxu0 0.0
        %1715 = vmatpush1.msra.mxu0 %v1204
        %1716 = vmatprep.subr.mxu0 0.0
        %1717 = vmatpush1.msra.mxu0 %v1203
        %1718 = vmatprep.subr.mxu0 0.0
        %1719 = vmatpush1.msra.mxu0 %v1202
        %1720 = vmatprep.subr.mxu0 0.0
        %1721 = vmatpush1.msra.mxu0 %v1201
        %1722 = vmatprep.subr.mxu0 0.0
        %1723 = vmatpush1.msra.mxu0 %v1200
        %1724 = vmatprep.subr.mxu0 0.0
        %1725 = vmatpush1.msra.mxu0 %v1199
        %1726 = vmatprep.subr.mxu0 0.0
        %1727 = vmatpush1.msra.mxu0 %v1198
        %1728 = vmatprep.subr.mxu0 0.0
        %1729 = vmatpush1.msra.mxu0 %v1197
        %1730 = vmatprep.subr.mxu0 0.0
        %1731 = vmatpush1.msra.mxu0 %v1196
        %1732 = vmatprep.subr.mxu0 0.0
        %1733 = vmatpush1.msra.mxu0 %v1195
        %1734 = vmatprep.subr.mxu0 0.0
        %1735 = vmatpush1.msra.mxu0 %v1194
        %1736 = vmatprep.subr.mxu0 0.0
        %1737 = vmatpush1.msra.mxu0 %v1193
        %1738 = vmatprep.subr.mxu0 0.0
        %1739 = vmatpush1.msra.mxu0 %v1192
        %1740 = vmatprep.subr.mxu0 0.0
        %1741 = vmatpush1.msra.mxu0 %v1191
        %1742 = vmatprep.subr.mxu0 0.0
        %1743 = vmatpush1.msra.mxu0 %v1190
        %1744 = vmatprep.subr.mxu0 0.0
        %1745 = vmatpush2.msra.mxu0 0.0
        %1746 = vmatprep.subr.mxu0 0.0
        %1747 = vmatpush2.msra.mxu0 0.0
        %1748 = vmatprep.subr.mxu0 0.0
        %1749 = vmatpush2.msra.mxu0 0.0
        %1750 = vmatprep.subr.mxu0 0.0
        %1751 = vmatpush2.msra.mxu0 0.0
        %1752 = vmatprep.subr.mxu0 0.0
        %1753 = vmatpush2.msra.mxu0 0.0
        %1754 = vmatprep.subr.mxu0 0.0
        %1755 = vmatpush2.msra.mxu0 0.0
        %1756 = vmatprep.subr.mxu0 0.0
        %1757 = vmatpush2.msra.mxu0 0.0
        %1758 = vmatprep.subr.mxu0 0.0
        %1759 = vmatpush2.msra.mxu0 0.0
        %1760 = vmatprep.subr.mxu0 0.0
        %1761 = vmatpush2.msra.mxu0 0.0
        %1762 = vmatprep.subr.mxu0 0.0
        %1763 = vmatpush2.msra.mxu0 0.0
        %1764 = vmatprep.subr.mxu0 0.0
        %1765 = vmatpush2.msra.mxu0 0.0
        %1766 = vmatprep.subr.mxu0 0.0
        %1767 = vmatpush2.msra.mxu0 0.0
        %1768 = vmatprep.subr.mxu0 0.0
        %1769 = vmatpush2.msra.mxu0 0.0
        %1770 = vmatprep.subr.mxu0 0.0
        %1771 = vmatpush2.msra.mxu0 0.0
        %1772 = vmatprep.subr.mxu0 0.0
        %1773 = vmatpush2.msra.mxu0 0.0
        %1774 = vmatprep.subr.mxu0 0.0
        %1775 = vmatpush2.msra.mxu0 0.0
        %1776 = vmatprep.mubr.f32.mxu0 0.0
        %1777 = vmatmul.mubr.f32.gmra.mxu0 %v1710
        %v1778 = vpop.f32.mrf.mxu0
        %v1779 = vadd.f32 %v1711, %v1778
        %v1780 = vpop.f32.mrf.mxu0
        %1781 = vdwg.mxu0
        %v1782 = vtanh.pop %v1779
        %1783 = vst [vmem:[#allocation3] sm:$0xff] %v1782
        %p1784 = scmp.eq.s32.totalorder %s30, 1
        // Predicated region
        $region65: #{tpu_custom_call.1} parent=43 // pred_check
          %p1785 = pneg %p1784
        $region66: #{tpu_custom_call.1} parent=43 // pred_check_branch
          %1787 = sbr.rel (%p1785) target = $region68
        $region67: #{tpu_custom_call.1} parent=43 // pred_region
          %v1788 = vld [vmem:[#allocation10] sm:$0xff]
          %v1789 = vld [vmem:[#allocation10 + $0x8] sm:$0xff]
          %v1790 = vld [vmem:[#allocation10 + $0x10] sm:$0xff]
          %v1791 = vld [vmem:[#allocation10 + $0x18] sm:$0xff]
          %v1792 = vld [vmem:[#allocation10 + $0x20] sm:$0xff]
          %v1793 = vld [vmem:[#allocation10 + $0x28] sm:$0xff]
          %v1794 = vld [vmem:[#allocation10 + $0x30] sm:$0xff]
          %v1795 = vld [vmem:[#allocation10 + $0x38] sm:$0xff]
          %v1796 = vld [vmem:[#allocation10 + $0x40] sm:$0xff]
          %v1797 = vld [vmem:[#allocation10 + $0x48] sm:$0xff]
          %v1798 = vld [vmem:[#allocation10 + $0x50] sm:$0xff]
          %v1799 = vld [vmem:[#allocation10 + $0x58] sm:$0xff]
          %v1800 = vld [vmem:[#allocation10 + $0x60] sm:$0xff]
          %v1801 = vld [vmem:[#allocation10 + $0x68] sm:$0xff]
          %v1802 = vld [vmem:[#allocation10 + $0x70] sm:$0xff]
          %v1803 = vld [vmem:[#allocation10 + $0x78] sm:$0xff]
          %v1804 = vld [vmem:[%s5] sm:$0x1]
          %v1806 = vlaneseq
          %v1807 = vshrl.u32 %v1806, 7
          %v1808 = vsub.s32 0, %v1807
          %v1809 = vrot.slane %v1804, %v1808
          %1811 = vmatprep.subr.mxu0 0.0
          %1812 = vmatpush1.msra.mxu0 %v1803
          %1813 = vmatprep.subr.mxu0 0.0
          %1814 = vmatpush1.msra.mxu0 %v1802
          %1815 = vmatprep.subr.mxu0 0.0
          %1816 = vmatpush1.msra.mxu0 %v1801
          %1817 = vmatprep.subr.mxu0 0.0
          %1818 = vmatpush1.msra.mxu0 %v1800
          %1819 = vmatprep.subr.mxu0 0.0
          %1820 = vmatpush1.msra.mxu0 %v1799
          %1821 = vmatprep.subr.mxu0 0.0
          %1822 = vmatpush1.msra.mxu0 %v1798
          %1823 = vmatprep.subr.mxu0 0.0
          %1824 = vmatpush1.msra.mxu0 %v1797
          %1825 = vmatprep.subr.mxu0 0.0
          %1826 = vmatpush1.msra.mxu0 %v1796
          %1827 = vmatprep.subr.mxu0 0.0
          %1828 = vmatpush1.msra.mxu0 %v1795
          %1829 = vmatprep.subr.mxu0 0.0
          %1830 = vmatpush1.msra.mxu0 %v1794
          %1831 = vmatprep.subr.mxu0 0.0
          %1832 = vmatpush1.msra.mxu0 %v1793
          %1833 = vmatprep.subr.mxu0 0.0
          %1834 = vmatpush1.msra.mxu0 %v1792
          %1835 = vmatprep.subr.mxu0 0.0
          %1836 = vmatpush1.msra.mxu0 %v1791
          %1837 = vmatprep.subr.mxu0 0.0
          %1838 = vmatpush1.msra.mxu0 %v1790
          %1839 = vmatprep.subr.mxu0 0.0
          %1840 = vmatpush1.msra.mxu0 %v1789
          %1841 = vmatprep.subr.mxu0 0.0
          %1842 = vmatpush1.msra.mxu0 %v1788
          %1843 = vmatprep.subr.mxu0 0.0
          %1844 = vmatpush2.msra.mxu0 0.0
          %1845 = vmatprep.subr.mxu0 0.0
          %1846 = vmatpush2.msra.mxu0 0.0
          %1847 = vmatprep.subr.mxu0 0.0
          %1848 = vmatpush2.msra.mxu0 0.0
          %1849 = vmatprep.subr.mxu0 0.0
          %1850 = vmatpush2.msra.mxu0 0.0
          %1851 = vmatprep.subr.mxu0 0.0
          %1852 = vmatpush2.msra.mxu0 0.0
          %1853 = vmatprep.subr.mxu0 0.0
          %1854 = vmatpush2.msra.mxu0 0.0
          %1855 = vmatprep.subr.mxu0 0.0
          %1856 = vmatpush2.msra.mxu0 0.0
          %1857 = vmatprep.subr.mxu0 0.0
          %1858 = vmatpush2.msra.mxu0 0.0
          %1859 = vmatprep.subr.mxu0 0.0
          %1860 = vmatpush2.msra.mxu0 0.0
          %1861 = vmatprep.subr.mxu0 0.0
          %1862 = vmatpush2.msra.mxu0 0.0
          %1863 = vmatprep.subr.mxu0 0.0
          %1864 = vmatpush2.msra.mxu0 0.0
          %1865 = vmatprep.subr.mxu0 0.0
          %1866 = vmatpush2.msra.mxu0 0.0
          %1867 = vmatprep.subr.mxu0 0.0
          %1868 = vmatpush2.msra.mxu0 0.0
          %1869 = vmatprep.subr.mxu0 0.0
          %1870 = vmatpush2.msra.mxu0 0.0
          %1871 = vmatprep.subr.mxu0 0.0
          %1872 = vmatpush2.msra.mxu0 0.0
          %1873 = vmatprep.subr.mxu0 0.0
          %1874 = vmatpush2.msra.mxu0 0.0
          %1875 = vmatprep.mubr.f32.mxu0 0.0
          %1876 = vmatmul.mubr.f32.gmra.mxu0 %v1782
          %v1877 = vpop.f32.mrf.mxu0
          %v1878 = vadd.f32 %v1809, %v1877
          %v1879 = vpop.f32.mrf.mxu0
          %1880 = vdwg.mxu0
          %1881 = vst [vmem:[%s329] sm:$0xff] %v1878
        $region68: #{tpu_custom_call.1} parent=43 // pred_fallthru
          _
        %s1882 = sand.u32 %s178, 1
        %s1883 = scalar_lea.sflag [#allocation6], %s1882
        %s1884 = sand.u32 %s178, 1
        %s1885 = smul.addr %s1884, 8
        %s1886 = scalar_lea.vmem [#allocation12], %s1885
        // Predicated region
        $region69: #{tpu_custom_call.1} parent=43 // pred_check
          %p1887 = pneg %p188
        $region70: #{tpu_custom_call.1} parent=43 // pred_check_branch
          %1889 = sbr.rel (%p1887) target = $region72
        $region71: #{tpu_custom_call.1} parent=43 // pred_region
          %s1891 = ssub.s32 128, 128
          %1892 = vsyncadd %s1883, %s1891
          %s1893 = smul.addr %s29, 128
          %s1894 = scalar_lea.hbm %s6, %s1893
          %s1896 = sshll.u32 %s1886, 4
          %s1897 = int_to_ptr.vmem [resolvable:$true] %s1896
          %1899 = dma.vmem_to_hbm [thread:$0]  %s1897, 128, %s1894, %s1883
        $region72: #{tpu_custom_call.1} parent=43 // pred_fallthru
          _
      $region44: #{tpu_custom_call.1} parent=5 // pred_fallthru
        _
      %p1900 = scmp.le.s32.totalorder 2, %s20
      // Predicated region
      $region73: #{tpu_custom_call.1} parent=5 // pred_check
        %p1901 = pneg %p1900
      $region74: #{tpu_custom_call.1} parent=5 // pred_check_branch
        %1903 = sbr.rel (%p1901) target = $region76
      $region75: #{tpu_custom_call.1} parent=5 // pred_region
        %s1904 = ssub.s32 %s20, 2
        // Predicated region
        $region77: #{tpu_custom_call.1} parent=75 // pred_check
          %p1905 = pneg %p194
        $region78: #{tpu_custom_call.1} parent=75 // pred_check_branch
          %1907 = sbr.rel (%p1905) target = $region80
        $region79: #{tpu_custom_call.1} parent=75 // pred_region
          %s1908 = sand.u32 %s179, 1
          %s1909 = scalar_lea.sflag [#allocation6], %s1908
          %s1910 = sand.u32 %s179, 1
          %s1911 = smul.addr %s1910, 8
          %s1912 = scalar_lea.vmem [#allocation12], %s1911
          %1913 = dma.done %s1909, 128
        $region80: #{tpu_custom_call.1} parent=75 // pred_fallthru
          _
      $region76: #{tpu_custom_call.1} parent=5 // pred_fallthru
        _
    $region6: #{tpu_custom_call.1} parent=1 // loop_footer
      %s24 = sadd.s32 1, %s20
    $region7: #{tpu_custom_call.1} parent=1 // loop_footer_branch
      %19 = sbr.rel target = $region3
    $region8: #{tpu_custom_call.1} parent=1 // loop_exit
      _
    %1914 = vsyncpa [#allocation5], 1
    %s1915 = scalar_lea.sflag [#allocation5], 1
    %1916 = vsyncpa %s1915, 1
    %1917 = vsyncpa [#allocation8], 1
    %1918 = vsyncpa [#allocation11], 1
    %1919 = vsyncpa [#allocation6], 1
    %s1920 = scalar_lea.sflag [#allocation6], 1
    %1921 = vsyncpa %s1920, 1

</llo_original>
